<compile_context>
chip_gen: v6e
topology: v6e:2x2x1
jax: 0.10.0
libtpu: 0.0.40
codegen_flags: <defaults>
</compile_context>

<pallas_src>
import functools
import math

import jax
import jax.numpy as jnp
from jax import lax
from jax.experimental import pallas as pl
from jax.experimental.pallas import tpu as pltpu

BN_EPS = 1e-5


def _round_up(x, m):
    return ((x + m - 1) // m) * m


# --------------------------- Pallas kernel ----------------------------------
def _conv_bn_relu_kernel(x_ref, w_ref, mask_ref, o_ref, sum_scr, ssq_scr,
                         *, shifts, l_out, inv_count):
    """Fused 3x3 conv + BatchNorm(training stats) + ReLU, one image per step.

    Grid is (phase, image):
      phase 0: conv + masked per-channel sum / sum-of-squares accumulation,
      phase 1: recompute conv, normalize with batch stats, ReLU, store bf16.

    x_ref:    (C_in_pad, Lin)            bf16 flattened padded image plane
    w_ref:    (9, C_out_pad, C_in_pad)   bf16 per-tap weights (t = kh*3 + kw)
    mask_ref: (1, L_out)                 f32, 1.0 on valid output lanes
    o_ref:    (C_out_pad, L_out)         bf16 output tile
    sum_scr, ssq_scr: (C_out_pad, 1)     f32 grid-persistent VMEM scratch
    """
    phase = pl.program_id(0)
    img = pl.program_id(1)

    # 3x3 conv as 9 statically shifted lane slices x 9 small MXU matmuls,
    # accumulated in f32.  Recomputed in both phases (cheaper than a conv
    # round trip through HBM for this bandwidth-bound block).
    x = x_ref[...]
    acc = jnp.dot(w_ref[0], x[:, shifts[0]:shifts[0] + l_out],
                  preferred_element_type=jnp.float32)
    for t in range(1, 9):
        s = shifts[t]
        acc = acc + jnp.dot(w_ref[t], x[:, s:s + l_out],
                            preferred_element_type=jnp.float32)

    @pl.when(jnp.logical_and(phase == 0, img == 0))
    def _():
        sum_scr[...] = jnp.zeros_like(sum_scr)
        ssq_scr[...] = jnp.zeros_like(ssq_scr)

    @pl.when(phase == 0)
    def _():
        masked = acc * mask_ref[...]                       # zero the junk lanes
        sum_scr[...] += jnp.sum(masked, axis=1, keepdims=True)
        ssq_scr[...] += jnp.sum(acc * masked, axis=1, keepdims=True)

    @pl.when(phase == 1)
    def _():
        inv_n = jnp.float32(inv_count)
        mean = sum_scr[...] * inv_n
        var = jnp.maximum(ssq_scr[...] * inv_n - mean * mean, 0.0)
        inv_std = lax.rsqrt(var + BN_EPS)
        y = (acc - mean) * inv_std
        o_ref[...] = jnp.maximum(y, 0.0).astype(o_ref.dtype)


# --------------------------- per-branch wrapper ------------------------------
def conv_bn_relu(x_nchw, weight):
    """Conv2d(3x3, s=1, p=1, bias=0) + BatchNorm2d(train, gamma=1, beta=0) + ReLU.

    x_nchw: (N, C_in, H, W) float; weight: (C_out, C_in, 3, 3) f32.
    Returns (N, C_out, H, W) bf16.
    """
    n, c_in, h, w = x_nchw.shape
    c_out = weight.shape[0]
    hp, wp = h + 2, w + 2

    # bf16 sublane packing: pad channel dims to multiples of 16.
    c_in_pad = _round_up(c_in, 16)
    c_out_pad = _round_up(c_out, 16)

    # Per-image flattened padded-width layout.  Output lane q = h*Wp + w reads
    # input lane q + kh*Wp + kw (no row wrap for valid outputs).
    l_out = _round_up(h * wp, 128)                  # lane-dense output width
    l_in = _round_up(l_out + 2 * wp + 2, 128)       # + right halo for the taps

    # One ~1.27x zero-padding pass instead of a 9x im2col slab in HBM.
    xp = jnp.pad(x_nchw, ((0, 0), (0, c_in_pad - c_in), (1, 1), (1, 1)))
    x_slab = xp.reshape(n, c_in_pad, hp * wp)
    x_slab = jnp.pad(x_slab, ((0, 0), (0, 0), (0, l_in - hp * wp)))
    x_slab = x_slab.astype(jnp.bfloat16)

    # Per-tap weights (9, C_out_pad, C_in_pad), tap order t = kh*3 + kw.
    wt = jnp.transpose(weight, (2, 3, 0, 1)).reshape(9, c_out, c_in)
    wt = jnp.pad(wt, ((0, 0), (0, c_out_pad - c_out), (0, c_in_pad - c_in)))
    wt = wt.astype(jnp.bfloat16)

    # 1.0 on lanes that correspond to real (h, w) output pixels.
    q = jnp.arange(l_out, dtype=jnp.int32)
    mask = ((q < h * wp) & (q % wp < w)).astype(jnp.float32).reshape(1, l_out)

    shifts = tuple(kh * wp + kw for kh in range(3) for kw in range(3))
    inv_count = 1.0 / float(n * h * w)

    kernel = functools.partial(_conv_bn_relu_kernel, shifts=shifts,
                               l_out=l_out, inv_count=inv_count)

    cost = pl.CostEstimate(
        flops=2 * 2 * n * 9 * c_out_pad * c_in_pad * l_out,
        transcendentals=0,
        bytes_accessed=(2 * x_slab.size * 2 + wt.size * 2 + mask.size * 4
                        + n * c_out_pad * l_out * 2),
    )

    out_slab = pl.pallas_call(
        kernel,
        out_shape=jax.ShapeDtypeStruct((n, c_out_pad, l_out), jnp.bfloat16),
        grid_spec=pltpu.PrefetchScalarGridSpec(
            num_scalar_prefetch=0,
            grid=(2, n),                 # (phase, image); sequential, last-minor
            in_specs=[
                pl.BlockSpec((None, c_in_pad, l_in), lambda ph, j: (j, 0, 0)),
                pl.BlockSpec((9, c_out_pad, c_in_pad), lambda ph, j: (0, 0, 0)),
                pl.BlockSpec((1, l_out), lambda ph, j: (0, 0)),
            ],
            # Phase 0 never writes the output; pinning its index to block 0
            # avoids writing back untouched buffers (each block stored once).
            out_specs=pl.BlockSpec((None, c_out_pad, l_out),
                                   lambda ph, j: (ph * j, 0, 0)),
            scratch_shapes=[pltpu.VMEM((c_out_pad, 1), jnp.float32),
                            pltpu.VMEM((c_out_pad, 1), jnp.float32)],
        ),
        compiler_params=pltpu.CompilerParams(
            dimension_semantics=("arbitrary", "arbitrary")),
        cost_estimate=cost,
    )(x_slab, wt, mask)

    out = out_slab[:, :c_out, :h * wp].reshape(n, c_out, h, wp)[..., :w]
    return out


# --------------------------- HSBlock wiring ----------------------------------
def make_hsblock_params(key, in_ch, s):
    """Parameter init mirroring HSBlock.__init__ / initialize_weights."""
    assert in_ch % s == 0, "demo uses in_ch divisible by s (matches torch.chunk)"
    per = in_ch // s
    channel_sizes = []
    acc_channels = 0
    for i in range(1, s):
        if i == 1:
            channels = per
            acc_channels = channels // 2
        elif i == s - 1:
            channels = per + acc_channels
        else:
            channels = per + acc_channels
            acc_channels = channels // 2
        channel_sizes.append(channels)

    params = []
    for ch in channel_sizes:
        key, sub = jax.random.split(key)
        # kaiming_normal_(mode='fan_out', nonlinearity='relu'): std = sqrt(2/(out_ch*9))
        std = math.sqrt(2.0 / (ch * 9))
        wgt = std * jax.random.normal(sub, (ch, ch, 3, 3), jnp.float32)
        # Conv bias is zero-initialized and cancelled by training-mode BN
        # (gamma=1, beta=0); kept only for parameter-structure fidelity.
        bias = jnp.zeros((ch,), jnp.float32)
        params.append((wgt, bias))
    return params


def hsblock_forward(x_nchw, params, s, conv_fn=conv_bn_relu):
    """HSBlock.forward in NCHW; output pieces concatenated once at the end."""
    n, c, h, w = x_nchw.shape
    per = c // s
    chunks = [x_nchw[:, i * per:(i + 1) * per] for i in range(s)]  # torch.chunk(s, 1)
    pieces = [chunks[0]]
    carry = None
    for i in range(1, s):
        if carry is None:
            xin = chunks[i]
        else:
            xin = jnp.concatenate([chunks[i], carry.astype(chunks[i].dtype)], axis=1)
        y = conv_fn(xin, params[i - 1][0])
        if i == s - 1:
            pieces.append(y)
        else:
            half = (y.shape[1] + 1) // 2                  # torch.chunk(2): ceil first
            pieces.append(y[:, :half])
            carry = y[:, half:]
    pieces = [p.astype(jnp.float32) for p in pieces]
    return jnp.concatenate(pieces, axis=1)


# --------------------------- pure-JAX reference ------------------------------
def _conv_bn_relu_ref(x_nchw, weight):
    y = lax.conv_general_dilated(
        x_nchw, weight, window_strides=(1, 1), padding=((1, 1), (1, 1)),
        dimension_numbers=("NCHW", "OIHW", "NCHW"),
        precision=lax.Precision.HIGHEST,
    )
    mean = jnp.mean(y, axis=(0, 2, 3), keepdims=True)
    var = jnp.mean(jnp.square(y - mean), axis=(0, 2, 3), keepdims=True)
    return jnp.maximum((y - mean) * lax.rsqrt(var + BN_EPS), 0.0)


if __name__ == "__main__":
    N, C, H, W, S = 2, 16, 16, 16, 4          # small demo shapes; C % S == 0
    key = jax.random.PRNGKey(0)
    kx, kp = jax.random.split(key)
    x = jax.random.normal(kx, (N, C, H, W), jnp.float32)
    params = make_hsblock_params(kp, C, S)

    fwd = jax.jit(lambda xi: hsblock_forward(xi, params, S, conv_fn=conv_bn_relu))
    out = jax.block_until_ready(fwd(x))

    ref_fwd = jax.jit(lambda xi: hsblock_forward(xi, params, S, conv_fn=_conv_bn_relu_ref))
    ref = jax.block_until_ready(ref_fwd(x))

    assert out.shape == (N, C, H, W), out.shape
    assert bool(jnp.all(jnp.isfinite(out)))
    max_err = float(jnp.max(jnp.abs(out - ref)))
    mean_err = float(jnp.mean(jnp.abs(out - ref)))
    # bf16 MXU inputs + bf16 branch outputs vs HIGHEST-precision f32 reference,
    # cascaded over 3 conv+BN+ReLU branches.
    assert max_err < 1.5e-1, f"max_err={max_err}"
    assert mean_err < 3e-2, f"mean_err={mean_err}"
    print("KERNEL_OK")
</pallas_src>

<mosaic_0001>
module attributes {stable_mosaic.version = 11 : i64} {
  func.func @_conv_bn_relu_kernel(%arg0: i32, %arg1: i32, %arg2: memref<1x16x512xbf16, #tpu.memory_space<vmem>>, %arg3: memref<9x16x16xbf16, #tpu.memory_space<vmem>>, %arg4: memref<1x384xf32, #tpu.memory_space<vmem>>, %arg5: memref<1x16x384xbf16, #tpu.memory_space<vmem>>, %arg6: memref<16x1xf32, #tpu.memory_space<vmem>>, %arg7: memref<16x1xf32, #tpu.memory_space<vmem>>) attributes {dimension_semantics = [#tpu.dimension_semantics<arbitrary>, #tpu.dimension_semantics<arbitrary>], iteration_bounds = array<i64: 2, 2>, scalar_prefetch = 0 : i64, scratch_operands = 2 : i64, tpu.core_type = #tpu.core_type<tc>, window_params = [{transform_indices = @transform_0, window_bounds = array<i64: 1, 16, 512>}, {pipeline_mode = #tpu.pipeline_mode<synchronous>, transform_indices = @transform_1, window_bounds = array<i64: 9, 16, 16>}, {pipeline_mode = #tpu.pipeline_mode<synchronous>, transform_indices = @transform_2, window_bounds = array<i64: 1, 384>}, {transform_indices = @transform_3, window_bounds = array<i64: 1, 16, 384>}]} {
    %c0 = arith.constant 0 : index
    %c0_0 = arith.constant 0 : index
    %c0_1 = arith.constant 0 : index
    %0 = vector.load %arg2[%c0, %c0_0, %c0_1] : memref<1x16x512xbf16, #tpu.memory_space<vmem>>, vector<1x16x512xbf16>
    %1 = vector.shape_cast %0 : vector<1x16x512xbf16> to vector<16x512xbf16>
    %c0_2 = arith.constant 0 : index
    %c0_3 = arith.constant 0 : index
    %c0_4 = arith.constant 0 : index
    %2 = vector.load %arg3[%c0_2, %c0_3, %c0_4] : memref<9x16x16xbf16, #tpu.memory_space<vmem>>, vector<1x16x16xbf16>
    %3 = vector.shape_cast %2 : vector<1x16x16xbf16> to vector<16x16xbf16>
    %4 = vector.extract_strided_slice %1 {offsets = [0, 0], sizes = [16, 384], strides = [1, 1]} : vector<16x512xbf16> to vector<16x384xbf16>
    %cst = arith.constant dense<0.000000e+00> : vector<16x384xf32>
    %5 = tpu.matmul %3, %4, %cst {dimension_numbers = #tpu.dot_dimension_numbers<[1], [0], [0], [1], [0, 0, 1, 1], [], []>} : vector<16x16xbf16>, vector<16x384xbf16>, vector<16x384xf32> -> vector<16x384xf32>
    %c1 = arith.constant 1 : index
    %c0_5 = arith.constant 0 : index
    %c0_6 = arith.constant 0 : index
    %6 = vector.load %arg3[%c1, %c0_5, %c0_6] : memref<9x16x16xbf16, #tpu.memory_space<vmem>>, vector<1x16x16xbf16>
    %7 = vector.shape_cast %6 : vector<1x16x16xbf16> to vector<16x16xbf16>
    %8 = vector.extract_strided_slice %1 {offsets = [0, 1], sizes = [16, 384], strides = [1, 1]} : vector<16x512xbf16> to vector<16x384xbf16>
    %cst_7 = arith.constant dense<0.000000e+00> : vector<16x384xf32>
    %9 = tpu.matmul %7, %8, %cst_7 {dimension_numbers = #tpu.dot_dimension_numbers<[1], [0], [0], [1], [0, 0, 1, 1], [], []>} : vector<16x16xbf16>, vector<16x384xbf16>, vector<16x384xf32> -> vector<16x384xf32>
    %10 = arith.addf %5, %9 : vector<16x384xf32>
    %c2 = arith.constant 2 : index
    %c0_8 = arith.constant 0 : index
    %c0_9 = arith.constant 0 : index
    %11 = vector.load %arg3[%c2, %c0_8, %c0_9] : memref<9x16x16xbf16, #tpu.memory_space<vmem>>, vector<1x16x16xbf16>
    %12 = vector.shape_cast %11 : vector<1x16x16xbf16> to vector<16x16xbf16>
    %13 = vector.extract_strided_slice %1 {offsets = [0, 2], sizes = [16, 384], strides = [1, 1]} : vector<16x512xbf16> to vector<16x384xbf16>
    %cst_10 = arith.constant dense<0.000000e+00> : vector<16x384xf32>
    %14 = tpu.matmul %12, %13, %cst_10 {dimension_numbers = #tpu.dot_dimension_numbers<[1], [0], [0], [1], [0, 0, 1, 1], [], []>} : vector<16x16xbf16>, vector<16x384xbf16>, vector<16x384xf32> -> vector<16x384xf32>
    %15 = arith.addf %10, %14 : vector<16x384xf32>
    %c3 = arith.constant 3 : index
    %c0_11 = arith.constant 0 : index
    %c0_12 = arith.constant 0 : index
    %16 = vector.load %arg3[%c3, %c0_11, %c0_12] : memref<9x16x16xbf16, #tpu.memory_space<vmem>>, vector<1x16x16xbf16>
    %17 = vector.shape_cast %16 : vector<1x16x16xbf16> to vector<16x16xbf16>
    %18 = vector.extract_strided_slice %1 {offsets = [0, 18], sizes = [16, 384], strides = [1, 1]} : vector<16x512xbf16> to vector<16x384xbf16>
    %cst_13 = arith.constant dense<0.000000e+00> : vector<16x384xf32>
    %19 = tpu.matmul %17, %18, %cst_13 {dimension_numbers = #tpu.dot_dimension_numbers<[1], [0], [0], [1], [0, 0, 1, 1], [], []>} : vector<16x16xbf16>, vector<16x384xbf16>, vector<16x384xf32> -> vector<16x384xf32>
    %20 = arith.addf %15, %19 : vector<16x384xf32>
    %c4 = arith.constant 4 : index
    %c0_14 = arith.constant 0 : index
    %c0_15 = arith.constant 0 : index
    %21 = vector.load %arg3[%c4, %c0_14, %c0_15] : memref<9x16x16xbf16, #tpu.memory_space<vmem>>, vector<1x16x16xbf16>
    %22 = vector.shape_cast %21 : vector<1x16x16xbf16> to vector<16x16xbf16>
    %23 = vector.extract_strided_slice %1 {offsets = [0, 19], sizes = [16, 384], strides = [1, 1]} : vector<16x512xbf16> to vector<16x384xbf16>
    %cst_16 = arith.constant dense<0.000000e+00> : vector<16x384xf32>
    %24 = tpu.matmul %22, %23, %cst_16 {dimension_numbers = #tpu.dot_dimension_numbers<[1], [0], [0], [1], [0, 0, 1, 1], [], []>} : vector<16x16xbf16>, vector<16x384xbf16>, vector<16x384xf32> -> vector<16x384xf32>
    %25 = arith.addf %20, %24 : vector<16x384xf32>
    %c5 = arith.constant 5 : index
    %c0_17 = arith.constant 0 : index
    %c0_18 = arith.constant 0 : index
    %26 = vector.load %arg3[%c5, %c0_17, %c0_18] : memref<9x16x16xbf16, #tpu.memory_space<vmem>>, vector<1x16x16xbf16>
    %27 = vector.shape_cast %26 : vector<1x16x16xbf16> to vector<16x16xbf16>
    %28 = vector.extract_strided_slice %1 {offsets = [0, 20], sizes = [16, 384], strides = [1, 1]} : vector<16x512xbf16> to vector<16x384xbf16>
    %cst_19 = arith.constant dense<0.000000e+00> : vector<16x384xf32>
    %29 = tpu.matmul %27, %28, %cst_19 {dimension_numbers = #tpu.dot_dimension_numbers<[1], [0], [0], [1], [0, 0, 1, 1], [], []>} : vector<16x16xbf16>, vector<16x384xbf16>, vector<16x384xf32> -> vector<16x384xf32>
    %30 = arith.addf %25, %29 : vector<16x384xf32>
    %c6 = arith.constant 6 : index
    %c0_20 = arith.constant 0 : index
    %c0_21 = arith.constant 0 : index
    %31 = vector.load %arg3[%c6, %c0_20, %c0_21] : memref<9x16x16xbf16, #tpu.memory_space<vmem>>, vector<1x16x16xbf16>
    %32 = vector.shape_cast %31 : vector<1x16x16xbf16> to vector<16x16xbf16>
    %33 = vector.extract_strided_slice %1 {offsets = [0, 36], sizes = [16, 384], strides = [1, 1]} : vector<16x512xbf16> to vector<16x384xbf16>
    %cst_22 = arith.constant dense<0.000000e+00> : vector<16x384xf32>
    %34 = tpu.matmul %32, %33, %cst_22 {dimension_numbers = #tpu.dot_dimension_numbers<[1], [0], [0], [1], [0, 0, 1, 1], [], []>} : vector<16x16xbf16>, vector<16x384xbf16>, vector<16x384xf32> -> vector<16x384xf32>
    %35 = arith.addf %30, %34 : vector<16x384xf32>
    %c7 = arith.constant 7 : index
    %c0_23 = arith.constant 0 : index
    %c0_24 = arith.constant 0 : index
    %36 = vector.load %arg3[%c7, %c0_23, %c0_24] : memref<9x16x16xbf16, #tpu.memory_space<vmem>>, vector<1x16x16xbf16>
    %37 = vector.shape_cast %36 : vector<1x16x16xbf16> to vector<16x16xbf16>
    %38 = vector.extract_strided_slice %1 {offsets = [0, 37], sizes = [16, 384], strides = [1, 1]} : vector<16x512xbf16> to vector<16x384xbf16>
    %cst_25 = arith.constant dense<0.000000e+00> : vector<16x384xf32>
    %39 = tpu.matmul %37, %38, %cst_25 {dimension_numbers = #tpu.dot_dimension_numbers<[1], [0], [0], [1], [0, 0, 1, 1], [], []>} : vector<16x16xbf16>, vector<16x384xbf16>, vector<16x384xf32> -> vector<16x384xf32>
    %40 = arith.addf %35, %39 : vector<16x384xf32>
    %c8 = arith.constant 8 : index
    %c0_26 = arith.constant 0 : index
    %c0_27 = arith.constant 0 : index
    %41 = vector.load %arg3[%c8, %c0_26, %c0_27] : memref<9x16x16xbf16, #tpu.memory_space<vmem>>, vector<1x16x16xbf16>
    %42 = vector.shape_cast %41 : vector<1x16x16xbf16> to vector<16x16xbf16>
    %43 = vector.extract_strided_slice %1 {offsets = [0, 38], sizes = [16, 384], strides = [1, 1]} : vector<16x512xbf16> to vector<16x384xbf16>
    %cst_28 = arith.constant dense<0.000000e+00> : vector<16x384xf32>
    %44 = tpu.matmul %42, %43, %cst_28 {dimension_numbers = #tpu.dot_dimension_numbers<[1], [0], [0], [1], [0, 0, 1, 1], [], []>} : vector<16x16xbf16>, vector<16x384xbf16>, vector<16x384xf32> -> vector<16x384xf32>
    %45 = arith.addf %40, %44 : vector<16x384xf32>
    %c0_i32 = arith.constant 0 : i32
    %46 = arith.cmpi eq, %arg0, %c0_i32 : i32
    %c0_i32_29 = arith.constant 0 : i32
    %47 = arith.cmpi eq, %arg1, %c0_i32_29 : i32
    %48 = arith.andi %46, %47 : i1
    %49 = arith.extui %48 : i1 to i32
    %c0_i32_30 = arith.constant 0 : i32
    %50 = arith.cmpi ne, %49, %c0_i32_30 : i32
    scf.if %50 {
      %cst_34 = arith.constant 0.000000e+00 : f32
      %57 = vector.broadcast %cst_34 : f32 to vector<16x1xf32>
      %c0_35 = arith.constant 0 : index
      %c0_36 = arith.constant 0 : index
      %58 = vector.load %arg6[%c0_35, %c0_36] : memref<16x1xf32, #tpu.memory_space<vmem>>, vector<16x1xf32>
      tpu.vector_store %arg6[%c0_35, %c0_36], %57 {strides = array<i32>} : memref<16x1xf32, #tpu.memory_space<vmem>>, vector<16x1xf32>,
      %cst_37 = arith.constant 0.000000e+00 : f32
      %59 = vector.broadcast %cst_37 : f32 to vector<16x1xf32>
      %c0_38 = arith.constant 0 : index
      %c0_39 = arith.constant 0 : index
      %60 = vector.load %arg7[%c0_38, %c0_39] : memref<16x1xf32, #tpu.memory_space<vmem>>, vector<16x1xf32>
      tpu.vector_store %arg7[%c0_38, %c0_39], %59 {strides = array<i32>} : memref<16x1xf32, #tpu.memory_space<vmem>>, vector<16x1xf32>,
    } else {
    }
    %c0_i32_31 = arith.constant 0 : i32
    %51 = arith.cmpi eq, %arg0, %c0_i32_31 : i32
    %52 = arith.extui %51 : i1 to i32
    %c0_i32_32 = arith.constant 0 : i32
    %53 = arith.cmpi ne, %52, %c0_i32_32 : i32
    scf.if %53 {
      %c0_34 = arith.constant 0 : index
      %c0_35 = arith.constant 0 : index
      %57 = vector.load %arg4[%c0_34, %c0_35] : memref<1x384xf32, #tpu.memory_space<vmem>>, vector<1x384xf32>
      %58 = vector.broadcast %57 : vector<1x384xf32> to vector<16x384xf32>
      %59 = arith.mulf %45, %58 : vector<16x384xf32>
      %c0_36 = arith.constant 0 : index
      %c0_37 = arith.constant 0 : index
      %60 = vector.load %arg6[%c0_36, %c0_37] : memref<16x1xf32, #tpu.memory_space<vmem>>, vector<16x1xf32>
      %cst_38 = arith.constant dense<0.000000e+00> : vector<16xf32>
      %61 = vector.multi_reduction <add>, %59, %cst_38 [1] : vector<16x384xf32> to vector<16xf32>
      %62 = vector.shape_cast %61 : vector<16xf32> to vector<16x1xf32>
      %63 = arith.addf %60, %62 : vector<16x1xf32>
      %c0_39 = arith.constant 0 : index
      %c0_40 = arith.constant 0 : index
      %64 = vector.load %arg6[%c0_39, %c0_40] : memref<16x1xf32, #tpu.memory_space<vmem>>, vector<16x1xf32>
      tpu.vector_store %arg6[%c0_39, %c0_40], %63 {strides = array<i32>} : memref<16x1xf32, #tpu.memory_space<vmem>>, vector<16x1xf32>,
      %c0_41 = arith.constant 0 : index
      %c0_42 = arith.constant 0 : index
      %65 = vector.load %arg7[%c0_41, %c0_42] : memref<16x1xf32, #tpu.memory_space<vmem>>, vector<16x1xf32>
      %66 = arith.mulf %45, %59 : vector<16x384xf32>
      %cst_43 = arith.constant dense<0.000000e+00> : vector<16xf32>
      %67 = vector.multi_reduction <add>, %66, %cst_43 [1] : vector<16x384xf32> to vector<16xf32>
      %68 = vector.shape_cast %67 : vector<16xf32> to vector<16x1xf32>
      %69 = arith.addf %65, %68 : vector<16x1xf32>
      %c0_44 = arith.constant 0 : index
      %c0_45 = arith.constant 0 : index
      %70 = vector.load %arg7[%c0_44, %c0_45] : memref<16x1xf32, #tpu.memory_space<vmem>>, vector<16x1xf32>
      tpu.vector_store %arg7[%c0_44, %c0_45], %69 {strides = array<i32>} : memref<16x1xf32, #tpu.memory_space<vmem>>, vector<16x1xf32>,
    } else {
    }
    %c1_i32 = arith.constant 1 : i32
    %54 = arith.cmpi eq, %arg0, %c1_i32 : i32
    %55 = arith.extui %54 : i1 to i32
    %c0_i32_33 = arith.constant 0 : i32
    %56 = arith.cmpi ne, %55, %c0_i32_33 : i32
    scf.if %56 {
      %c0_34 = arith.constant 0 : index
      %c0_35 = arith.constant 0 : index
      %57 = vector.load %arg6[%c0_34, %c0_35] : memref<16x1xf32, #tpu.memory_space<vmem>>, vector<16x1xf32>
      %cst_36 = arith.constant 0.001953125 : f32
      %58 = vector.broadcast %cst_36 : f32 to vector<16x1xf32>
      %59 = arith.mulf %57, %58 : vector<16x1xf32>
      %c0_37 = arith.constant 0 : index
      %c0_38 = arith.constant 0 : index
      %60 = vector.load %arg7[%c0_37, %c0_38] : memref<16x1xf32, #tpu.memory_space<vmem>>, vector<16x1xf32>
      %cst_39 = arith.constant 0.001953125 : f32
      %61 = vector.broadcast %cst_39 : f32 to vector<16x1xf32>
      %62 = arith.mulf %60, %61 : vector<16x1xf32>
      %63 = arith.mulf %59, %59 : vector<16x1xf32>
      %64 = arith.subf %62, %63 : vector<16x1xf32>
      %cst_40 = arith.constant 0.000000e+00 : f32
      %65 = vector.broadcast %cst_40 : f32 to vector<16x1xf32>
      %66 = arith.maximumf %64, %65 : vector<16x1xf32>
      %cst_41 = arith.constant 9.99999974E-6 : f32
      %67 = vector.broadcast %cst_41 : f32 to vector<16x1xf32>
      %68 = arith.addf %66, %67 : vector<16x1xf32>
      %69 = math.rsqrt %68 : vector<16x1xf32>
      %70 = vector.broadcast %59 : vector<16x1xf32> to vector<16x384xf32>
      %71 = arith.subf %45, %70 : vector<16x384xf32>
      %72 = vector.broadcast %69 : vector<16x1xf32> to vector<16x384xf32>
      %73 = arith.mulf %71, %72 : vector<16x384xf32>
      %cst_42 = arith.constant 0.000000e+00 : f32
      %74 = vector.broadcast %cst_42 : f32 to vector<16x384xf32>
      %75 = arith.maximumf %73, %74 : vector<16x384xf32>
      %76 = arith.truncf %75 : vector<16x384xf32> to vector<16x384xbf16>
      %c0_43 = arith.constant 0 : index
      %c0_44 = arith.constant 0 : index
      %c0_45 = arith.constant 0 : index
      %77 = vector.load %arg5[%c0_43, %c0_44, %c0_45] : memref<1x16x384xbf16, #tpu.memory_space<vmem>>, vector<1x16x384xbf16>
      %78 = vector.shape_cast %77 : vector<1x16x384xbf16> to vector<16x384xbf16>
      %79 = vector.shape_cast %76 : vector<16x384xbf16> to vector<1x16x384xbf16>
      tpu.vector_store %arg5[%c0_43, %c0_44, %c0_45], %79 {strides = array<i32>} : memref<1x16x384xbf16, #tpu.memory_space<vmem>>, vector<1x16x384xbf16>,
    } else {
    }
    return
  }
  func.func @transform_0(%arg0: i32, %arg1: i32) -> (i32, i32, i32) {
    %c0_i32 = arith.constant 0 : i32
    %c0_i32_0 = arith.constant 0 : i32
    %c0_i32_1 = arith.constant 0 : i32
    return %arg1, %c0_i32, %c0_i32_0 : i32, i32, i32
  }
  func.func @transform_1(%arg0: i32, %arg1: i32) -> (i32, i32, i32) {
    %c0_i32 = arith.constant 0 : i32
    %c0_i32_0 = arith.constant 0 : i32
    %c0_i32_1 = arith.constant 0 : i32
    %c0_i32_2 = arith.constant 0 : i32
    return %c0_i32, %c0_i32_0, %c0_i32_1 : i32, i32, i32
  }
  func.func @transform_2(%arg0: i32, %arg1: i32) -> (i32, i32) {
    %c0_i32 = arith.constant 0 : i32
    %c0_i32_0 = arith.constant 0 : i32
    %c0_i32_1 = arith.constant 0 : i32
    return %c0_i32, %c0_i32_0 : i32, i32
  }
  func.func @transform_3(%arg0: i32, %arg1: i32) -> (i32, i32, i32) {
    %0 = arith.muli %arg0, %arg1 : i32
    %c0_i32 = arith.constant 0 : i32
    %c0_i32_0 = arith.constant 0 : i32
    %c0_i32_1 = arith.constant 0 : i32
    return %0, %c0_i32, %c0_i32_0 : i32, i32, i32
  }
}

</mosaic_0001>

<llo_original>
// kernel: _lambda_.3
$region0: #{_lambda_.3}
  #allocation0 [shape = 'u32[]', space=smem, size = 0x4, offset = 0x4, fixed_abs, tag = 'smem constant byte address 0x4 - core index']
  #allocation1 [shape = 'u32[144,128]{1,0:T(1,128)}', space=vmem, size = 0x12000, scoped, tag = 'internal scratch']
  #allocation2 [shape = 'f32[16,1]{1,0:T(8,128)}', space=vmem, size = 0x2000, scoped, tag = 'scratch operand']
  #allocation3 [shape = 'f32[16,1]{1,0:T(8,128)}', space=vmem, size = 0x2000, scoped, tag = 'scratch operand']
  %s0 = inlined_call_operand.vmem [shape: bf16[2,16,512], index: 0, kind: input, shape index: {}]
  %s1 = inlined_call_operand.vmem [shape: bf16[9,16,16], index: 1, kind: input, shape index: {}]
  %s2 = inlined_call_operand.vmem [shape: f32[1,384], index: 2, kind: input, shape index: {}]
  %s3 = inlined_call_operand.vmem [shape: bf16[2,16,384], index: 3, kind: output, shape index: {}]
  %s4 = sld [smem:[#allocation0]]
  $region57: #{_lambda_.3} parent=0
    _
  %s6 = ssub.s32 1, %s4
  %s7 = scalar_select 0, %s6, %s4
  loop: start=0, step=1, limit=6
  $region2: #{_lambda_.3} parent=0 // loop_pre_header
    _
  $region3: #{_lambda_.3} parent=0 // loop_header
    %s9 = sphi 0, %s13
    %p10 = scmp.ge.s32.totalorder %s9, 6
    %s16 = sphi 0, %s28
    %s17 = sphi 0, %s24
    %s18 = sphi 0, %s16
    %s19 = sphi 0, %s17
    %s20 = sphi 0, %s18
    %s21 = sphi 0, %s19
    %s31 = sphi 0, %s33
    %s34 = sphi 0, %s31
    %s35 = sphi 0, %s34
    %s51 = sphi 0, %s35
    %s55 = sphi 0, %s55
    %s57 = sphi 0, %s55
    %s58 = sphi 0, %s57
    %s72 = sphi 0, %s58
    %s76 = sphi 0, %s76
    %s78 = sphi 0, %s76
    %s79 = sphi 0, %s78
    %s93 = sphi 0, %s79
    %s101 = sphi 0, %s103
    %s104 = sphi 0, %s101
    %s105 = sphi 0, %s104
    %s121 = sphi 0, %s105
  $region4: #{_lambda_.3} parent=0 // loop_header_branch
    %12 = sbr.rel (%p10) target = $region8
  $region5: #{_lambda_.3} parent=0 // loop_body
    %s14 = ssub.s32 %s9, 1
    %s15 = ssub.s32 %s9, 2
    %s22 = sadd.s32 1, %s17
    %p23 = scmp.ge.s32.totalorder %s22, 2
    %s24 = scalar_select %p23, 0, %s22
    %s25 = sadd.s32 1, %s16
    %s26 = scalar_select %p23, %s25, %s16
    %p27 = scmp.ge.s32.totalorder %s26, 2
    %s28 = scalar_select %p27, 0, %s26
    %s29 = ssub.s32 %s17, %s24
    %p30 = scmp.eq.s32.totalorder %s29, 0
    %s32 = sadd.s32 %s31, 1
    %s33 = scalar_select %p30, %s31, %s32
    %p36 = pneg %p30
    %p37 = scmp.eq.s32.totalorder %s9, 3
    %p38 = por %p36, %p37
    %p39 = scmp.ne.s32.totalorder %s31, %s34
    %p40 = scmp.eq.s32.totalorder %s9, 0
    %p41 = por %p39, %p40
    %p42 = scmp.ne.s32.totalorder %s31, %s34
    %p43 = scmp.eq.s32.totalorder %s14, 3
    %p44 = por %p42, %p43
    %p45 = scmp.ne.s32.totalorder %s34, %s35
    %p46 = scmp.eq.s32.totalorder %s14, 0
    %p47 = por %p45, %p46
    %p48 = scmp.ne.s32.totalorder %s34, %s35
    %p49 = scmp.eq.s32.totalorder %s15, 3
    %p50 = por %p48, %p49
    %p52 = scmp.ne.s32.totalorder %s35, %s51
    %p53 = scmp.eq.s32.totalorder %s15, 0
    %p54 = por %p52, %p53
    %s56 = sadd.s32 %s55, 1
    %p59 = scmp.eq.s32.totalorder %s9, 3
    %p60 = scmp.ne.s32.totalorder %s55, %s57
    %p61 = scmp.eq.s32.totalorder %s9, 0
    %p62 = por %p60, %p61
    %p63 = scmp.ne.s32.totalorder %s55, %s57
    %p64 = scmp.eq.s32.totalorder %s14, 3
    %p65 = por %p63, %p64
    %p66 = scmp.ne.s32.totalorder %s57, %s58
    %p67 = scmp.eq.s32.totalorder %s14, 0
    %p68 = por %p66, %p67
    %p69 = scmp.ne.s32.totalorder %s57, %s58
    %p70 = scmp.eq.s32.totalorder %s15, 3
    %p71 = por %p69, %p70
    %p73 = scmp.ne.s32.totalorder %s58, %s72
    %p74 = scmp.eq.s32.totalorder %s15, 0
    %p75 = por %p73, %p74
    %s77 = sadd.s32 %s76, 1
    %p80 = scmp.eq.s32.totalorder %s9, 3
    %p81 = scmp.ne.s32.totalorder %s76, %s78
    %p82 = scmp.eq.s32.totalorder %s9, 0
    %p83 = por %p81, %p82
    %p84 = scmp.ne.s32.totalorder %s76, %s78
    %p85 = scmp.eq.s32.totalorder %s14, 3
    %p86 = por %p84, %p85
    %p87 = scmp.ne.s32.totalorder %s78, %s79
    %p88 = scmp.eq.s32.totalorder %s14, 0
    %p89 = por %p87, %p88
    %p90 = scmp.ne.s32.totalorder %s78, %s79
    %p91 = scmp.eq.s32.totalorder %s15, 3
    %p92 = por %p90, %p91
    %p94 = scmp.ne.s32.totalorder %s79, %s93
    %p95 = scmp.eq.s32.totalorder %s15, 0
    %p96 = por %p94, %p95
    %s97 = smul.u32 %s16, %s17
    %s98 = smul.u32 %s28, %s24
    %s99 = ssub.s32 %s97, %s98
    %p100 = scmp.eq.s32.totalorder %s99, 0
    %s102 = sadd.s32 %s101, 1
    %s103 = scalar_select %p100, %s101, %s102
    %p106 = pneg %p100
    %p107 = scmp.eq.s32.totalorder %s9, 3
    %p108 = por %p106, %p107
    %p109 = scmp.ne.s32.totalorder %s101, %s104
    %p110 = scmp.eq.s32.totalorder %s9, 0
    %p111 = por %p109, %p110
    %p112 = scmp.ne.s32.totalorder %s101, %s104
    %p113 = scmp.eq.s32.totalorder %s14, 3
    %p114 = por %p112, %p113
    %p115 = scmp.ne.s32.totalorder %s104, %s105
    %p116 = scmp.eq.s32.totalorder %s14, 0
    %p117 = por %p115, %p116
    %p118 = scmp.ne.s32.totalorder %s104, %s105
    %p119 = scmp.eq.s32.totalorder %s15, 3
    %p120 = por %p118, %p119
    %p122 = scmp.ne.s32.totalorder %s105, %s121
    %p123 = scmp.eq.s32.totalorder %s15, 0
    %p124 = por %p122, %p123
    %p125 = scmp.le.s32.totalorder 1, %s9
    %p126 = scmp.lt.s32.totalorder %s9, 5
    %p127 = pnand %p125, %p126
    %p128 = pneg %p127
    // Predicated region
    $region9: #{_lambda_.3} parent=5 // pred_check
      _
    $region10: #{_lambda_.3} parent=5 // pred_check_branch
      %130 = sbr.rel (%p127) target = $region12
    $region11: #{_lambda_.3} parent=5 // pred_region
      %s131 = ssub.s32 %s9, 1
      // Predicated region
      $region13: #{_lambda_.3} parent=11 // pred_check
        %p132 = pneg %p68
      $region14: #{_lambda_.3} parent=11 // pred_check_branch
        %134 = sbr.rel (%p132) target = $region16
      $region15: #{_lambda_.3} parent=11 // pred_region
        _
      $region16: #{_lambda_.3} parent=11 // pred_fallthru
        _
      // Predicated region
      $region17: #{_lambda_.3} parent=11 // pred_check
        %p135 = pneg %p89
      $region18: #{_lambda_.3} parent=11 // pred_check_branch
        %137 = sbr.rel (%p135) target = $region20
      $region19: #{_lambda_.3} parent=11 // pred_region
        _
      $region20: #{_lambda_.3} parent=11 // pred_fallthru
        _
    $region12: #{_lambda_.3} parent=5 // pred_fallthru
      _
    %p138 = scmp.lt.s32.totalorder %s9, 4
    // Predicated region
    $region21: #{_lambda_.3} parent=5 // pred_check
      %p139 = pneg %p138
    $region22: #{_lambda_.3} parent=5 // pred_check_branch
      %141 = sbr.rel (%p139) target = $region24
    $region23: #{_lambda_.3} parent=5 // pred_region
      // Predicated region
      $region25: #{_lambda_.3} parent=23 // pred_check
        %p142 = pneg %p41
      $region26: #{_lambda_.3} parent=23 // pred_check_branch
        %144 = sbr.rel (%p142) target = $region28
      $region27: #{_lambda_.3} parent=23 // pred_region
        %p145 = scmp.lt.s32.totalorder %s17, 1
        %s146 = scalar_select %p145, %s17, 1
        %s147 = smul.addr %s146, 8
        %s148 = smul.addr %s147, 4
        %s149 = scalar_lea.vmem %s0, %s148
      $region28: #{_lambda_.3} parent=23 // pred_fallthru
        _
    $region24: #{_lambda_.3} parent=5 // pred_fallthru
      _
    %p150 = scmp.le.s32.totalorder 1, %s9
    %p151 = scmp.lt.s32.totalorder %s9, 5
    %p152 = pnand %p150, %p151
    %p153 = pneg %p152
    // Predicated region
    $region29: #{_lambda_.3} parent=5 // pred_check
      _
    $region30: #{_lambda_.3} parent=5 // pred_check_branch
      %155 = sbr.rel (%p152) target = $region32
    $region31: #{_lambda_.3} parent=5 // pred_region
      %s156 = ssub.s32 %s9, 1
      %p157 = scmp.lt.s32.totalorder %s19, 1
      %s158 = scalar_select %p157, %s19, 1
      %s159 = smul.addr %s158, 8
      %s160 = smul.addr %s159, 4
      %s161 = scalar_lea.vmem %s0, %s160
      %p162 = pneg %p47
      %p163 = pneg %p44
      %p164 = pneg %p68
      %p165 = pneg %p65
      %p166 = pneg %p89
      %p167 = pneg %p86
      %p168 = pneg %p117
      %p169 = pneg %p114
      %s170 = smul.u32 %s18, %s19
      %p171 = scmp.lt.s32.totalorder %s170, 1
      %s172 = scalar_select %p171, %s170, 1
      %s173 = smul.addr %s172, 6
      %s174 = smul.addr %s173, 4
      %s175 = scalar_lea.vmem %s3, %s174
      %p176 = scmp.lt.s32.totalorder %s19, 1
      %s177 = scalar_select %p176, %s19, 1
      %s178 = smul.addr %s177, 8
      %s179 = smul.addr %s178, 4
      %s180 = scalar_lea.vmem %s0, %s179
      %s181 = smul.u32 %s18, %s19
      %p182 = scmp.lt.s32.totalorder %s181, 1
      %s183 = scalar_select %p182, %s181, 1
      %s184 = smul.addr %s183, 6
      %s185 = smul.addr %s184, 4
      %s186 = scalar_lea.vmem %s3, %s185
      %s187 = smul.u32 %s18, %s19
      %v189 = vld [vmem:[%s180] sm:$0xff]
      %v190 = vld [vmem:[%s180 + $0x8] sm:$0xff]
      %v191 = vld [vmem:[%s180 + $0x10] sm:$0xff]
      %v192 = vld [vmem:[%s180 + $0x18] sm:$0xff]
      %v193 = vld [vmem:[%s1] sm:$0xf]
      %v194 = vld [vmem:[%s1 + $0x4] sm:$0xf]
      %s195 = scalar_lea.vmem %s1, 8
      %v196 = vld [vmem:[%s195] sm:$0xf]
      %v197 = vld [vmem:[%s195 + $0x4] sm:$0xf]
      %v200 = vunpack.c.l.b16 %v196
      %v201 = vunpack.c.l.b16 %v197
      %v202 = vpack.c.b16 %v201, %v200
      %v207 = vunpack.c.l.b16 %v189
      %v208 = vunpack.c.h.b16 %v189
      %v209 = vunpack.c.l.b16 %v190
      %v210 = vunpack.c.h.b16 %v190
      %v211 = vunpack.c.l.b16 %v191
      %v212 = vunpack.c.h.b16 %v191
      %v213 = vunpack.c.l.b16 %v192
      %v214 = vunpack.c.h.b16 %v192
      %v215 = vpack.c.b16 %v211, %v207
      %v216 = vpack.c.b16 %v212, %v208
      %v217 = vpack.c.b16 %v213, %v209
      %v218 = vpack.c.b16 %v214, %v210
      %219 = vrot.lane.b32.xlu0 %v215, 127
      %v220 = vpop.permute.xlu0 %219
      %221 = vrot.lane.b32.xlu0 %v216, 127
      %v222 = vpop.permute.xlu0 %221
      %223 = vrot.lane.b32.xlu0 %v217, 127
      %v224 = vpop.permute.xlu0 %223
      %225 = vrot.lane.b32.xlu0 %v218, 127
      %v226 = vpop.permute.xlu0 %225
      %vm227 = vcmask 1039360
      %v228 = vsel %vm227, %v220, %v222
      %v229 = vsel %vm227, %v222, %v224
      %v230 = vsel %vm227, %v224, %v226
      %vm234 = vcmask 130048
      %v236 = vsel %vm234, %v202, 0
      %238 = vmatprep.subr.bf16.mxu0 0
      %239 = vmatpush1.bf16.msra.mxu0 0
      %240 = vmatprep.subr.bf16.mxu0 0
      %241 = vmatpush1.bf16.msra.mxu0 0
      %242 = vmatprep.subr.bf16.mxu0 0
      %243 = vmatpush1.bf16.msra.mxu0 0
      %244 = vmatprep.subr.bf16.mxu0 0
      %245 = vmatpush1.bf16.msra.mxu0 0
      %246 = vmatprep.subr.bf16.mxu0 0
      %247 = vmatpush1.bf16.msra.mxu0 0
      %248 = vmatprep.subr.bf16.mxu0 0
      %249 = vmatpush1.bf16.msra.mxu0 0
      %250 = vmatprep.subr.bf16.mxu0 0
      %251 = vmatpush1.bf16.msra.mxu0 0
      %252 = vmatprep.subr.bf16.mxu0 %v229
      %253 = vmatpush1.bf16.msra.mxu0 %v228
      %254 = vmatprep.subr.bf16.mxu0 0
      %255 = vmatpush2.bf16.msra.mxu0 0
      %256 = vmatprep.subr.bf16.mxu0 0
      %257 = vmatpush2.bf16.msra.mxu0 0
      %258 = vmatprep.subr.bf16.mxu0 0
      %259 = vmatpush2.bf16.msra.mxu0 0
      %260 = vmatprep.subr.bf16.mxu0 0
      %261 = vmatpush2.bf16.msra.mxu0 0
      %262 = vmatprep.subr.bf16.mxu0 0
      %263 = vmatpush2.bf16.msra.mxu0 0
      %264 = vmatprep.subr.bf16.mxu0 0
      %265 = vmatpush2.bf16.msra.mxu0 0
      %266 = vmatprep.subr.bf16.mxu0 0
      %267 = vmatpush2.bf16.msra.mxu0 0
      %268 = vmatprep.subr.bf16.mxu0 0
      %269 = vmatpush2.bf16.msra.mxu0 0
      %270 = vmatprep.mubr.bf16.mxu0 0
      %271 = vmatmul.mubr.bf16.gmra.mxu0 %v236
      %v272 = vpop.f32.mrf.mxu0
      %v273 = vadd.f32 0.0, %v272
      %v274 = vpop.f32.mrf.mxu0
      %v275 = vadd.f32 0.0, %v274
      %v276 = vpop.f32.mrf.mxu0
      %v277 = vadd.f32 0.0, %v276
      %v278 = vpop.f32.mrf.mxu0
      %v279 = vadd.f32 0.0, %v278
      %280 = vdwg.mxu0
      %281 = vmatprep.subr.bf16.mxu0 0
      %282 = vmatpush1.bf16.msra.mxu0 0
      %283 = vmatprep.subr.bf16.mxu0 0
      %284 = vmatpush1.bf16.msra.mxu0 0
      %285 = vmatprep.subr.bf16.mxu0 0
      %286 = vmatpush1.bf16.msra.mxu0 0
      %287 = vmatprep.subr.bf16.mxu0 0
      %288 = vmatpush1.bf16.msra.mxu0 0
      %289 = vmatprep.subr.bf16.mxu0 0
      %290 = vmatpush1.bf16.msra.mxu0 0
      %291 = vmatprep.subr.bf16.mxu0 0
      %292 = vmatpush1.bf16.msra.mxu0 0
      %293 = vmatprep.subr.bf16.mxu0 0
      %294 = vmatpush1.bf16.msra.mxu0 0
      %295 = vmatprep.subr.bf16.mxu0 0
      %296 = vmatpush1.bf16.msra.mxu0 %v230
      %297 = vmatprep.subr.bf16.mxu0 0
      %298 = vmatpush2.bf16.msra.mxu0 0
      %299 = vmatprep.subr.bf16.mxu0 0
      %300 = vmatpush2.bf16.msra.mxu0 0
      %301 = vmatprep.subr.bf16.mxu0 0
      %302 = vmatpush2.bf16.msra.mxu0 0
      %303 = vmatprep.subr.bf16.mxu0 0
      %304 = vmatpush2.bf16.msra.mxu0 0
      %305 = vmatprep.subr.bf16.mxu0 0
      %306 = vmatpush2.bf16.msra.mxu0 0
      %307 = vmatprep.subr.bf16.mxu0 0
      %308 = vmatpush2.bf16.msra.mxu0 0
      %309 = vmatprep.subr.bf16.mxu0 0
      %310 = vmatpush2.bf16.msra.mxu0 0
      %311 = vmatprep.subr.bf16.mxu0 0
      %312 = vmatpush2.bf16.msra.mxu0 0
      %313 = vmatprep.mubr.bf16.mxu0 0
      %314 = vmatmul.mubr.bf16.gmra.mxu0 %v236
      %v315 = vpop.f32.mrf.mxu0
      %v316 = vadd.f32 0.0, %v315
      %v317 = vpop.f32.mrf.mxu0
      %v318 = vpop.f32.mrf.mxu0
      %v319 = vadd.f32 0.0, %v318
      %v320 = vpop.f32.mrf.mxu0
      %321 = vdwg.mxu0
      %v324 = vunpack.c.l.b16 %v193
      %v325 = vunpack.c.l.b16 %v194
      %v326 = vpack.c.b16 %v325, %v324
      %v331 = vsel %vm234, %v326, 0
      %333 = vmatprep.subr.bf16.mxu0 0
      %334 = vmatpush1.bf16.msra.mxu0 0
      %335 = vmatprep.subr.bf16.mxu0 0
      %336 = vmatpush1.bf16.msra.mxu0 0
      %337 = vmatprep.subr.bf16.mxu0 0
      %338 = vmatpush1.bf16.msra.mxu0 0
      %339 = vmatprep.subr.bf16.mxu0 0
      %340 = vmatpush1.bf16.msra.mxu0 0
      %341 = vmatprep.subr.bf16.mxu0 0
      %342 = vmatpush1.bf16.msra.mxu0 0
      %343 = vmatprep.subr.bf16.mxu0 0
      %344 = vmatpush1.bf16.msra.mxu0 0
      %345 = vmatprep.subr.bf16.mxu0 0
      %346 = vmatpush1.bf16.msra.mxu0 0
      %347 = vmatprep.subr.bf16.mxu0 %v216
      %348 = vmatpush1.bf16.msra.mxu0 %v215
      %349 = vmatprep.subr.bf16.mxu0 0
      %350 = vmatpush2.bf16.msra.mxu0 0
      %351 = vmatprep.subr.bf16.mxu0 0
      %352 = vmatpush2.bf16.msra.mxu0 0
      %353 = vmatprep.subr.bf16.mxu0 0
      %354 = vmatpush2.bf16.msra.mxu0 0
      %355 = vmatprep.subr.bf16.mxu0 0
      %356 = vmatpush2.bf16.msra.mxu0 0
      %357 = vmatprep.subr.bf16.mxu0 0
      %358 = vmatpush2.bf16.msra.mxu0 0
      %359 = vmatprep.subr.bf16.mxu0 0
      %360 = vmatpush2.bf16.msra.mxu0 0
      %361 = vmatprep.subr.bf16.mxu0 0
      %362 = vmatpush2.bf16.msra.mxu0 0
      %363 = vmatprep.subr.bf16.mxu0 0
      %364 = vmatpush2.bf16.msra.mxu0 0
      %365 = vmatprep.mubr.bf16.mxu0 0
      %366 = vmatmul.mubr.bf16.gmra.mxu0 %v331
      %v367 = vpop.f32.mrf.mxu0
      %v368 = vadd.f32 %v273, %v367
      %v369 = vpop.f32.mrf.mxu0
      %v370 = vadd.f32 %v275, %v369
      %v371 = vpop.f32.mrf.mxu0
      %v372 = vadd.f32 %v277, %v371
      %v373 = vpop.f32.mrf.mxu0
      %v374 = vadd.f32 %v279, %v373
      %375 = vdwg.mxu0
      %376 = vmatprep.subr.bf16.mxu0 0
      %377 = vmatpush1.bf16.msra.mxu0 0
      %378 = vmatprep.subr.bf16.mxu0 0
      %379 = vmatpush1.bf16.msra.mxu0 0
      %380 = vmatprep.subr.bf16.mxu0 0
      %381 = vmatpush1.bf16.msra.mxu0 0
      %382 = vmatprep.subr.bf16.mxu0 0
      %383 = vmatpush1.bf16.msra.mxu0 0
      %384 = vmatprep.subr.bf16.mxu0 0
      %385 = vmatpush1.bf16.msra.mxu0 0
      %386 = vmatprep.subr.bf16.mxu0 0
      %387 = vmatpush1.bf16.msra.mxu0 0
      %388 = vmatprep.subr.bf16.mxu0 0
      %389 = vmatpush1.bf16.msra.mxu0 0
      %390 = vmatprep.subr.bf16.mxu0 0
      %391 = vmatpush1.bf16.msra.mxu0 %v217
      %392 = vmatprep.subr.bf16.mxu0 0
      %393 = vmatpush2.bf16.msra.mxu0 0
      %394 = vmatprep.subr.bf16.mxu0 0
      %395 = vmatpush2.bf16.msra.mxu0 0
      %396 = vmatprep.subr.bf16.mxu0 0
      %397 = vmatpush2.bf16.msra.mxu0 0
      %398 = vmatprep.subr.bf16.mxu0 0
      %399 = vmatpush2.bf16.msra.mxu0 0
      %400 = vmatprep.subr.bf16.mxu0 0
      %401 = vmatpush2.bf16.msra.mxu0 0
      %402 = vmatprep.subr.bf16.mxu0 0
      %403 = vmatpush2.bf16.msra.mxu0 0
      %404 = vmatprep.subr.bf16.mxu0 0
      %405 = vmatpush2.bf16.msra.mxu0 0
      %406 = vmatprep.subr.bf16.mxu0 0
      %407 = vmatpush2.bf16.msra.mxu0 0
      %408 = vmatprep.mubr.bf16.mxu0 0
      %409 = vmatmul.mubr.bf16.gmra.mxu0 %v331
      %v410 = vpop.f32.mrf.mxu0
      %v411 = vadd.f32 %v316, %v410
      %v412 = vpop.f32.mrf.mxu0
      %v413 = vpop.f32.mrf.mxu0
      %v414 = vadd.f32 %v319, %v413
      %v415 = vpop.f32.mrf.mxu0
      %416 = vdwg.mxu0
      %s417 = scalar_lea.vmem %s1, 16
      %v418 = vld [vmem:[%s417] sm:$0xf]
      %v419 = vld [vmem:[%s417 + $0x4] sm:$0xf]
      %v422 = vunpack.c.l.b16 %v418
      %v423 = vunpack.c.l.b16 %v419
      %v424 = vpack.c.b16 %v423, %v422
      %425 = vrot.lane.b32.xlu0 %v215, 126
      %v426 = vpop.permute.xlu0 %425
      %427 = vrot.lane.b32.xlu0 %v216, 126
      %v428 = vpop.permute.xlu0 %427
      %429 = vrot.lane.b32.xlu0 %v217, 126
      %v430 = vpop.permute.xlu0 %429
      %431 = vrot.lane.b32.xlu0 %v218, 126
      %v432 = vpop.permute.xlu0 %431
      %vm433 = vcmask 1031168
      %v434 = vsel %vm433, %v426, %v428
      %v435 = vsel %vm433, %v428, %v430
      %v436 = vsel %vm433, %v430, %v432
      %v441 = vsel %vm234, %v424, 0
      %443 = vmatprep.subr.bf16.mxu0 0
      %444 = vmatpush1.bf16.msra.mxu0 0
      %445 = vmatprep.subr.bf16.mxu0 0
      %446 = vmatpush1.bf16.msra.mxu0 0
      %447 = vmatprep.subr.bf16.mxu0 0
      %448 = vmatpush1.bf16.msra.mxu0 0
      %449 = vmatprep.subr.bf16.mxu0 0
      %450 = vmatpush1.bf16.msra.mxu0 0
      %451 = vmatprep.subr.bf16.mxu0 0
      %452 = vmatpush1.bf16.msra.mxu0 0
      %453 = vmatprep.subr.bf16.mxu0 0
      %454 = vmatpush1.bf16.msra.mxu0 0
      %455 = vmatprep.subr.bf16.mxu0 0
      %456 = vmatpush1.bf16.msra.mxu0 0
      %457 = vmatprep.subr.bf16.mxu0 %v435
      %458 = vmatpush1.bf16.msra.mxu0 %v434
      %459 = vmatprep.subr.bf16.mxu0 0
      %460 = vmatpush2.bf16.msra.mxu0 0
      %461 = vmatprep.subr.bf16.mxu0 0
      %462 = vmatpush2.bf16.msra.mxu0 0
      %463 = vmatprep.subr.bf16.mxu0 0
      %464 = vmatpush2.bf16.msra.mxu0 0
      %465 = vmatprep.subr.bf16.mxu0 0
      %466 = vmatpush2.bf16.msra.mxu0 0
      %467 = vmatprep.subr.bf16.mxu0 0
      %468 = vmatpush2.bf16.msra.mxu0 0
      %469 = vmatprep.subr.bf16.mxu0 0
      %470 = vmatpush2.bf16.msra.mxu0 0
      %471 = vmatprep.subr.bf16.mxu0 0
      %472 = vmatpush2.bf16.msra.mxu0 0
      %473 = vmatprep.subr.bf16.mxu0 0
      %474 = vmatpush2.bf16.msra.mxu0 0
      %475 = vmatprep.mubr.bf16.mxu0 0
      %476 = vmatmul.mubr.bf16.gmra.mxu0 %v441
      %v477 = vpop.f32.mrf.mxu0
      %v478 = vadd.f32 0.0, %v477
      %v479 = vpop.f32.mrf.mxu0
      %v480 = vadd.f32 0.0, %v479
      %v481 = vpop.f32.mrf.mxu0
      %v482 = vadd.f32 0.0, %v481
      %v483 = vpop.f32.mrf.mxu0
      %v484 = vadd.f32 0.0, %v483
      %485 = vdwg.mxu0
      %486 = vmatprep.subr.bf16.mxu0 0
      %487 = vmatpush1.bf16.msra.mxu0 0
      %488 = vmatprep.subr.bf16.mxu0 0
      %489 = vmatpush1.bf16.msra.mxu0 0
      %490 = vmatprep.subr.bf16.mxu0 0
      %491 = vmatpush1.bf16.msra.mxu0 0
      %492 = vmatprep.subr.bf16.mxu0 0
      %493 = vmatpush1.bf16.msra.mxu0 0
      %494 = vmatprep.subr.bf16.mxu0 0
      %495 = vmatpush1.bf16.msra.mxu0 0
      %496 = vmatprep.subr.bf16.mxu0 0
      %497 = vmatpush1.bf16.msra.mxu0 0
      %498 = vmatprep.subr.bf16.mxu0 0
      %499 = vmatpush1.bf16.msra.mxu0 0
      %500 = vmatprep.subr.bf16.mxu0 0
      %501 = vmatpush1.bf16.msra.mxu0 %v436
      %502 = vmatprep.subr.bf16.mxu0 0
      %503 = vmatpush2.bf16.msra.mxu0 0
      %504 = vmatprep.subr.bf16.mxu0 0
      %505 = vmatpush2.bf16.msra.mxu0 0
      %506 = vmatprep.subr.bf16.mxu0 0
      %507 = vmatpush2.bf16.msra.mxu0 0
      %508 = vmatprep.subr.bf16.mxu0 0
      %509 = vmatpush2.bf16.msra.mxu0 0
      %510 = vmatprep.subr.bf16.mxu0 0
      %511 = vmatpush2.bf16.msra.mxu0 0
      %512 = vmatprep.subr.bf16.mxu0 0
      %513 = vmatpush2.bf16.msra.mxu0 0
      %514 = vmatprep.subr.bf16.mxu0 0
      %515 = vmatpush2.bf16.msra.mxu0 0
      %516 = vmatprep.subr.bf16.mxu0 0
      %517 = vmatpush2.bf16.msra.mxu0 0
      %518 = vmatprep.mubr.bf16.mxu0 0
      %519 = vmatmul.mubr.bf16.gmra.mxu0 %v441
      %v520 = vpop.f32.mrf.mxu0
      %v521 = vadd.f32 0.0, %v520
      %v522 = vpop.f32.mrf.mxu0
      %v523 = vpop.f32.mrf.mxu0
      %v524 = vadd.f32 0.0, %v523
      %v525 = vpop.f32.mrf.mxu0
      %526 = vdwg.mxu0
      %v527 = vadd.f32 %v368, %v478
      %v528 = vadd.f32 %v370, %v480
      %v529 = vadd.f32 %v411, %v521
      %v530 = vadd.f32 %v372, %v482
      %v531 = vadd.f32 %v374, %v484
      %v532 = vadd.f32 %v414, %v524
      %s533 = scalar_lea.vmem %s1, 24
      %v534 = vld [vmem:[%s533] sm:$0xf]
      %v535 = vld [vmem:[%s533 + $0x4] sm:$0xf]
      %v538 = vunpack.c.l.b16 %v534
      %v539 = vunpack.c.l.b16 %v535
      %v540 = vpack.c.b16 %v539, %v538
      %541 = vrot.lane.b32.xlu0 %v215, 110
      %v542 = vpop.permute.xlu0 %541
      %543 = vrot.lane.b32.xlu0 %v216, 110
      %v544 = vpop.permute.xlu0 %543
      %545 = vrot.lane.b32.xlu0 %v217, 110
      %v546 = vpop.permute.xlu0 %545
      %547 = vrot.lane.b32.xlu0 %v218, 110
      %v548 = vpop.permute.xlu0 %547
      %vm549 = vcmask 900096
      %v550 = vsel %vm549, %v542, %v544
      %v551 = vsel %vm549, %v544, %v546
      %v552 = vsel %vm549, %v546, %v548
      %v557 = vsel %vm234, %v540, 0
      %559 = vmatprep.subr.bf16.mxu0 0
      %560 = vmatpush1.bf16.msra.mxu0 0
      %561 = vmatprep.subr.bf16.mxu0 0
      %562 = vmatpush1.bf16.msra.mxu0 0
      %563 = vmatprep.subr.bf16.mxu0 0
      %564 = vmatpush1.bf16.msra.mxu0 0
      %565 = vmatprep.subr.bf16.mxu0 0
      %566 = vmatpush1.bf16.msra.mxu0 0
      %567 = vmatprep.subr.bf16.mxu0 0
      %568 = vmatpush1.bf16.msra.mxu0 0
      %569 = vmatprep.subr.bf16.mxu0 0
      %570 = vmatpush1.bf16.msra.mxu0 0
      %571 = vmatprep.subr.bf16.mxu0 0
      %572 = vmatpush1.bf16.msra.mxu0 0
      %573 = vmatprep.subr.bf16.mxu0 %v551
      %574 = vmatpush1.bf16.msra.mxu0 %v550
      %575 = vmatprep.subr.bf16.mxu0 0
      %576 = vmatpush2.bf16.msra.mxu0 0
      %577 = vmatprep.subr.bf16.mxu0 0
      %578 = vmatpush2.bf16.msra.mxu0 0
      %579 = vmatprep.subr.bf16.mxu0 0
      %580 = vmatpush2.bf16.msra.mxu0 0
      %581 = vmatprep.subr.bf16.mxu0 0
      %582 = vmatpush2.bf16.msra.mxu0 0
      %583 = vmatprep.subr.bf16.mxu0 0
      %584 = vmatpush2.bf16.msra.mxu0 0
      %585 = vmatprep.subr.bf16.mxu0 0
      %586 = vmatpush2.bf16.msra.mxu0 0
      %587 = vmatprep.subr.bf16.mxu0 0
      %588 = vmatpush2.bf16.msra.mxu0 0
      %589 = vmatprep.subr.bf16.mxu0 0
      %590 = vmatpush2.bf16.msra.mxu0 0
      %591 = vmatprep.mubr.bf16.mxu0 0
      %592 = vmatmul.mubr.bf16.gmra.mxu0 %v557
      %v593 = vpop.f32.mrf.mxu0
      %v594 = vadd.f32 0.0, %v593
      %v595 = vpop.f32.mrf.mxu0
      %v596 = vadd.f32 0.0, %v595
      %v597 = vpop.f32.mrf.mxu0
      %v598 = vadd.f32 0.0, %v597
      %v599 = vpop.f32.mrf.mxu0
      %v600 = vadd.f32 0.0, %v599
      %601 = vdwg.mxu0
      %602 = vmatprep.subr.bf16.mxu0 0
      %603 = vmatpush1.bf16.msra.mxu0 0
      %604 = vmatprep.subr.bf16.mxu0 0
      %605 = vmatpush1.bf16.msra.mxu0 0
      %606 = vmatprep.subr.bf16.mxu0 0
      %607 = vmatpush1.bf16.msra.mxu0 0
      %608 = vmatprep.subr.bf16.mxu0 0
      %609 = vmatpush1.bf16.msra.mxu0 0
      %610 = vmatprep.subr.bf16.mxu0 0
      %611 = vmatpush1.bf16.msra.mxu0 0
      %612 = vmatprep.subr.bf16.mxu0 0
      %613 = vmatpush1.bf16.msra.mxu0 0
      %614 = vmatprep.subr.bf16.mxu0 0
      %615 = vmatpush1.bf16.msra.mxu0 0
      %616 = vmatprep.subr.bf16.mxu0 0
      %617 = vmatpush1.bf16.msra.mxu0 %v552
      %618 = vmatprep.subr.bf16.mxu0 0
      %619 = vmatpush2.bf16.msra.mxu0 0
      %620 = vmatprep.subr.bf16.mxu0 0
      %621 = vmatpush2.bf16.msra.mxu0 0
      %622 = vmatprep.subr.bf16.mxu0 0
      %623 = vmatpush2.bf16.msra.mxu0 0
      %624 = vmatprep.subr.bf16.mxu0 0
      %625 = vmatpush2.bf16.msra.mxu0 0
      %626 = vmatprep.subr.bf16.mxu0 0
      %627 = vmatpush2.bf16.msra.mxu0 0
      %628 = vmatprep.subr.bf16.mxu0 0
      %629 = vmatpush2.bf16.msra.mxu0 0
      %630 = vmatprep.subr.bf16.mxu0 0
      %631 = vmatpush2.bf16.msra.mxu0 0
      %632 = vmatprep.subr.bf16.mxu0 0
      %633 = vmatpush2.bf16.msra.mxu0 0
      %634 = vmatprep.mubr.bf16.mxu0 0
      %635 = vmatmul.mubr.bf16.gmra.mxu0 %v557
      %v636 = vpop.f32.mrf.mxu0
      %v637 = vadd.f32 0.0, %v636
      %v638 = vpop.f32.mrf.mxu0
      %v639 = vpop.f32.mrf.mxu0
      %v640 = vadd.f32 0.0, %v639
      %v641 = vpop.f32.mrf.mxu0
      %642 = vdwg.mxu0
      %v643 = vadd.f32 %v527, %v594
      %v644 = vadd.f32 %v528, %v596
      %v645 = vadd.f32 %v529, %v637
      %v646 = vadd.f32 %v530, %v598
      %v647 = vadd.f32 %v531, %v600
      %v648 = vadd.f32 %v532, %v640
      %s649 = scalar_lea.vmem %s1, 32
      %v650 = vld [vmem:[%s649] sm:$0xf]
      %v651 = vld [vmem:[%s649 + $0x4] sm:$0xf]
      %v654 = vunpack.c.l.b16 %v650
      %v655 = vunpack.c.l.b16 %v651
      %v656 = vpack.c.b16 %v655, %v654
      %657 = vrot.lane.b32.xlu0 %v215, 109
      %v658 = vpop.permute.xlu0 %657
      %659 = vrot.lane.b32.xlu0 %v216, 109
      %v660 = vpop.permute.xlu0 %659
      %661 = vrot.lane.b32.xlu0 %v217, 109
      %v662 = vpop.permute.xlu0 %661
      %663 = vrot.lane.b32.xlu0 %v218, 109
      %v664 = vpop.permute.xlu0 %663
      %vm665 = vcmask 891904
      %v666 = vsel %vm665, %v658, %v660
      %v667 = vsel %vm665, %v660, %v662
      %v668 = vsel %vm665, %v662, %v664
      %v673 = vsel %vm234, %v656, 0
      %675 = vmatprep.subr.bf16.mxu0 0
      %676 = vmatpush1.bf16.msra.mxu0 0
      %677 = vmatprep.subr.bf16.mxu0 0
      %678 = vmatpush1.bf16.msra.mxu0 0
      %679 = vmatprep.subr.bf16.mxu0 0
      %680 = vmatpush1.bf16.msra.mxu0 0
      %681 = vmatprep.subr.bf16.mxu0 0
      %682 = vmatpush1.bf16.msra.mxu0 0
      %683 = vmatprep.subr.bf16.mxu0 0
      %684 = vmatpush1.bf16.msra.mxu0 0
      %685 = vmatprep.subr.bf16.mxu0 0
      %686 = vmatpush1.bf16.msra.mxu0 0
      %687 = vmatprep.subr.bf16.mxu0 0
      %688 = vmatpush1.bf16.msra.mxu0 0
      %689 = vmatprep.subr.bf16.mxu0 %v667
      %690 = vmatpush1.bf16.msra.mxu0 %v666
      %691 = vmatprep.subr.bf16.mxu0 0
      %692 = vmatpush2.bf16.msra.mxu0 0
      %693 = vmatprep.subr.bf16.mxu0 0
      %694 = vmatpush2.bf16.msra.mxu0 0
      %695 = vmatprep.subr.bf16.mxu0 0
      %696 = vmatpush2.bf16.msra.mxu0 0
      %697 = vmatprep.subr.bf16.mxu0 0
      %698 = vmatpush2.bf16.msra.mxu0 0
      %699 = vmatprep.subr.bf16.mxu0 0
      %700 = vmatpush2.bf16.msra.mxu0 0
      %701 = vmatprep.subr.bf16.mxu0 0
      %702 = vmatpush2.bf16.msra.mxu0 0
      %703 = vmatprep.subr.bf16.mxu0 0
      %704 = vmatpush2.bf16.msra.mxu0 0
      %705 = vmatprep.subr.bf16.mxu0 0
      %706 = vmatpush2.bf16.msra.mxu0 0
      %707 = vmatprep.mubr.bf16.mxu0 0
      %708 = vmatmul.mubr.bf16.gmra.mxu0 %v673
      %v709 = vpop.f32.mrf.mxu0
      %v710 = vadd.f32 0.0, %v709
      %v711 = vpop.f32.mrf.mxu0
      %v712 = vadd.f32 0.0, %v711
      %v713 = vpop.f32.mrf.mxu0
      %v714 = vadd.f32 0.0, %v713
      %v715 = vpop.f32.mrf.mxu0
      %v716 = vadd.f32 0.0, %v715
      %717 = vdwg.mxu0
      %718 = vmatprep.subr.bf16.mxu0 0
      %719 = vmatpush1.bf16.msra.mxu0 0
      %720 = vmatprep.subr.bf16.mxu0 0
      %721 = vmatpush1.bf16.msra.mxu0 0
      %722 = vmatprep.subr.bf16.mxu0 0
      %723 = vmatpush1.bf16.msra.mxu0 0
      %724 = vmatprep.subr.bf16.mxu0 0
      %725 = vmatpush1.bf16.msra.mxu0 0
      %726 = vmatprep.subr.bf16.mxu0 0
      %727 = vmatpush1.bf16.msra.mxu0 0
      %728 = vmatprep.subr.bf16.mxu0 0
      %729 = vmatpush1.bf16.msra.mxu0 0
      %730 = vmatprep.subr.bf16.mxu0 0
      %731 = vmatpush1.bf16.msra.mxu0 0
      %732 = vmatprep.subr.bf16.mxu0 0
      %733 = vmatpush1.bf16.msra.mxu0 %v668
      %734 = vmatprep.subr.bf16.mxu0 0
      %735 = vmatpush2.bf16.msra.mxu0 0
      %736 = vmatprep.subr.bf16.mxu0 0
      %737 = vmatpush2.bf16.msra.mxu0 0
      %738 = vmatprep.subr.bf16.mxu0 0
      %739 = vmatpush2.bf16.msra.mxu0 0
      %740 = vmatprep.subr.bf16.mxu0 0
      %741 = vmatpush2.bf16.msra.mxu0 0
      %742 = vmatprep.subr.bf16.mxu0 0
      %743 = vmatpush2.bf16.msra.mxu0 0
      %744 = vmatprep.subr.bf16.mxu0 0
      %745 = vmatpush2.bf16.msra.mxu0 0
      %746 = vmatprep.subr.bf16.mxu0 0
      %747 = vmatpush2.bf16.msra.mxu0 0
      %748 = vmatprep.subr.bf16.mxu0 0
      %749 = vmatpush2.bf16.msra.mxu0 0
      %750 = vmatprep.mubr.bf16.mxu0 0
      %751 = vmatmul.mubr.bf16.gmra.mxu0 %v673
      %v752 = vpop.f32.mrf.mxu0
      %v753 = vadd.f32 0.0, %v752
      %v754 = vpop.f32.mrf.mxu0
      %v755 = vpop.f32.mrf.mxu0
      %v756 = vadd.f32 0.0, %v755
      %v757 = vpop.f32.mrf.mxu0
      %758 = vdwg.mxu0
      %v759 = vadd.f32 %v643, %v710
      %v760 = vadd.f32 %v644, %v712
      %v761 = vadd.f32 %v645, %v753
      %v762 = vadd.f32 %v646, %v714
      %v763 = vadd.f32 %v647, %v716
      %v764 = vadd.f32 %v648, %v756
      %s765 = scalar_lea.vmem %s1, 40
      %v766 = vld [vmem:[%s765] sm:$0xf]
      %v767 = vld [vmem:[%s765 + $0x4] sm:$0xf]
      %v770 = vunpack.c.l.b16 %v766
      %v771 = vunpack.c.l.b16 %v767
      %v772 = vpack.c.b16 %v771, %v770
      %773 = vrot.lane.b32.xlu0 %v215, 108
      %v774 = vpop.permute.xlu0 %773
      %775 = vrot.lane.b32.xlu0 %v216, 108
      %v776 = vpop.permute.xlu0 %775
      %777 = vrot.lane.b32.xlu0 %v217, 108
      %v778 = vpop.permute.xlu0 %777
      %779 = vrot.lane.b32.xlu0 %v218, 108
      %v780 = vpop.permute.xlu0 %779
      %vm781 = vcmask 883712
      %v782 = vsel %vm781, %v774, %v776
      %v783 = vsel %vm781, %v776, %v778
      %v784 = vsel %vm781, %v778, %v780
      %v789 = vsel %vm234, %v772, 0
      %791 = vmatprep.subr.bf16.mxu0 0
      %792 = vmatpush1.bf16.msra.mxu0 0
      %793 = vmatprep.subr.bf16.mxu0 0
      %794 = vmatpush1.bf16.msra.mxu0 0
      %795 = vmatprep.subr.bf16.mxu0 0
      %796 = vmatpush1.bf16.msra.mxu0 0
      %797 = vmatprep.subr.bf16.mxu0 0
      %798 = vmatpush1.bf16.msra.mxu0 0
      %799 = vmatprep.subr.bf16.mxu0 0
      %800 = vmatpush1.bf16.msra.mxu0 0
      %801 = vmatprep.subr.bf16.mxu0 0
      %802 = vmatpush1.bf16.msra.mxu0 0
      %803 = vmatprep.subr.bf16.mxu0 0
      %804 = vmatpush1.bf16.msra.mxu0 0
      %805 = vmatprep.subr.bf16.mxu0 %v783
      %806 = vmatpush1.bf16.msra.mxu0 %v782
      %807 = vmatprep.subr.bf16.mxu0 0
      %808 = vmatpush2.bf16.msra.mxu0 0
      %809 = vmatprep.subr.bf16.mxu0 0
      %810 = vmatpush2.bf16.msra.mxu0 0
      %811 = vmatprep.subr.bf16.mxu0 0
      %812 = vmatpush2.bf16.msra.mxu0 0
      %813 = vmatprep.subr.bf16.mxu0 0
      %814 = vmatpush2.bf16.msra.mxu0 0
      %815 = vmatprep.subr.bf16.mxu0 0
      %816 = vmatpush2.bf16.msra.mxu0 0
      %817 = vmatprep.subr.bf16.mxu0 0
      %818 = vmatpush2.bf16.msra.mxu0 0
      %819 = vmatprep.subr.bf16.mxu0 0
      %820 = vmatpush2.bf16.msra.mxu0 0
      %821 = vmatprep.subr.bf16.mxu0 0
      %822 = vmatpush2.bf16.msra.mxu0 0
      %823 = vmatprep.mubr.bf16.mxu0 0
      %824 = vmatmul.mubr.bf16.gmra.mxu0 %v789
      %v825 = vpop.f32.mrf.mxu0
      %v826 = vadd.f32 0.0, %v825
      %v827 = vpop.f32.mrf.mxu0
      %v828 = vadd.f32 0.0, %v827
      %v829 = vpop.f32.mrf.mxu0
      %v830 = vadd.f32 0.0, %v829
      %v831 = vpop.f32.mrf.mxu0
      %v832 = vadd.f32 0.0, %v831
      %833 = vdwg.mxu0
      %834 = vmatprep.subr.bf16.mxu0 0
      %835 = vmatpush1.bf16.msra.mxu0 0
      %836 = vmatprep.subr.bf16.mxu0 0
      %837 = vmatpush1.bf16.msra.mxu0 0
      %838 = vmatprep.subr.bf16.mxu0 0
      %839 = vmatpush1.bf16.msra.mxu0 0
      %840 = vmatprep.subr.bf16.mxu0 0
      %841 = vmatpush1.bf16.msra.mxu0 0
      %842 = vmatprep.subr.bf16.mxu0 0
      %843 = vmatpush1.bf16.msra.mxu0 0
      %844 = vmatprep.subr.bf16.mxu0 0
      %845 = vmatpush1.bf16.msra.mxu0 0
      %846 = vmatprep.subr.bf16.mxu0 0
      %847 = vmatpush1.bf16.msra.mxu0 0
      %848 = vmatprep.subr.bf16.mxu0 0
      %849 = vmatpush1.bf16.msra.mxu0 %v784
      %850 = vmatprep.subr.bf16.mxu0 0
      %851 = vmatpush2.bf16.msra.mxu0 0
      %852 = vmatprep.subr.bf16.mxu0 0
      %853 = vmatpush2.bf16.msra.mxu0 0
      %854 = vmatprep.subr.bf16.mxu0 0
      %855 = vmatpush2.bf16.msra.mxu0 0
      %856 = vmatprep.subr.bf16.mxu0 0
      %857 = vmatpush2.bf16.msra.mxu0 0
      %858 = vmatprep.subr.bf16.mxu0 0
      %859 = vmatpush2.bf16.msra.mxu0 0
      %860 = vmatprep.subr.bf16.mxu0 0
      %861 = vmatpush2.bf16.msra.mxu0 0
      %862 = vmatprep.subr.bf16.mxu0 0
      %863 = vmatpush2.bf16.msra.mxu0 0
      %864 = vmatprep.subr.bf16.mxu0 0
      %865 = vmatpush2.bf16.msra.mxu0 0
      %866 = vmatprep.mubr.bf16.mxu0 0
      %867 = vmatmul.mubr.bf16.gmra.mxu0 %v789
      %v868 = vpop.f32.mrf.mxu0
      %v869 = vadd.f32 0.0, %v868
      %v870 = vpop.f32.mrf.mxu0
      %v871 = vpop.f32.mrf.mxu0
      %v872 = vadd.f32 0.0, %v871
      %v873 = vpop.f32.mrf.mxu0
      %874 = vdwg.mxu0
      %v875 = vadd.f32 %v759, %v826
      %v876 = vadd.f32 %v760, %v828
      %v877 = vadd.f32 %v761, %v869
      %v878 = vadd.f32 %v762, %v830
      %v879 = vadd.f32 %v763, %v832
      %v880 = vadd.f32 %v764, %v872
      %s881 = scalar_lea.vmem %s1, 48
      %v882 = vld [vmem:[%s881] sm:$0xf]
      %v883 = vld [vmem:[%s881 + $0x4] sm:$0xf]
      %v886 = vunpack.c.l.b16 %v882
      %v887 = vunpack.c.l.b16 %v883
      %v888 = vpack.c.b16 %v887, %v886
      %889 = vrot.lane.b32.xlu0 %v215, 92
      %v890 = vpop.permute.xlu0 %889
      %891 = vrot.lane.b32.xlu0 %v216, 92
      %v892 = vpop.permute.xlu0 %891
      %893 = vrot.lane.b32.xlu0 %v217, 92
      %v894 = vpop.permute.xlu0 %893
      %895 = vrot.lane.b32.xlu0 %v218, 92
      %v896 = vpop.permute.xlu0 %895
      %vm897 = vcmask 752640
      %v898 = vsel %vm897, %v890, %v892
      %v899 = vsel %vm897, %v892, %v894
      %v900 = vsel %vm897, %v894, %v896
      %v905 = vsel %vm234, %v888, 0
      %907 = vmatprep.subr.bf16.mxu0 0
      %908 = vmatpush1.bf16.msra.mxu0 0
      %909 = vmatprep.subr.bf16.mxu0 0
      %910 = vmatpush1.bf16.msra.mxu0 0
      %911 = vmatprep.subr.bf16.mxu0 0
      %912 = vmatpush1.bf16.msra.mxu0 0
      %913 = vmatprep.subr.bf16.mxu0 0
      %914 = vmatpush1.bf16.msra.mxu0 0
      %915 = vmatprep.subr.bf16.mxu0 0
      %916 = vmatpush1.bf16.msra.mxu0 0
      %917 = vmatprep.subr.bf16.mxu0 0
      %918 = vmatpush1.bf16.msra.mxu0 0
      %919 = vmatprep.subr.bf16.mxu0 0
      %920 = vmatpush1.bf16.msra.mxu0 0
      %921 = vmatprep.subr.bf16.mxu0 %v899
      %922 = vmatpush1.bf16.msra.mxu0 %v898
      %923 = vmatprep.subr.bf16.mxu0 0
      %924 = vmatpush2.bf16.msra.mxu0 0
      %925 = vmatprep.subr.bf16.mxu0 0
      %926 = vmatpush2.bf16.msra.mxu0 0
      %927 = vmatprep.subr.bf16.mxu0 0
      %928 = vmatpush2.bf16.msra.mxu0 0
      %929 = vmatprep.subr.bf16.mxu0 0
      %930 = vmatpush2.bf16.msra.mxu0 0
      %931 = vmatprep.subr.bf16.mxu0 0
      %932 = vmatpush2.bf16.msra.mxu0 0
      %933 = vmatprep.subr.bf16.mxu0 0
      %934 = vmatpush2.bf16.msra.mxu0 0
      %935 = vmatprep.subr.bf16.mxu0 0
      %936 = vmatpush2.bf16.msra.mxu0 0
      %937 = vmatprep.subr.bf16.mxu0 0
      %938 = vmatpush2.bf16.msra.mxu0 0
      %939 = vmatprep.mubr.bf16.mxu0 0
      %940 = vmatmul.mubr.bf16.gmra.mxu0 %v905
      %v941 = vpop.f32.mrf.mxu0
      %v942 = vadd.f32 0.0, %v941
      %v943 = vpop.f32.mrf.mxu0
      %v944 = vadd.f32 0.0, %v943
      %v945 = vpop.f32.mrf.mxu0
      %v946 = vadd.f32 0.0, %v945
      %v947 = vpop.f32.mrf.mxu0
      %v948 = vadd.f32 0.0, %v947
      %949 = vdwg.mxu0
      %950 = vmatprep.subr.bf16.mxu0 0
      %951 = vmatpush1.bf16.msra.mxu0 0
      %952 = vmatprep.subr.bf16.mxu0 0
      %953 = vmatpush1.bf16.msra.mxu0 0
      %954 = vmatprep.subr.bf16.mxu0 0
      %955 = vmatpush1.bf16.msra.mxu0 0
      %956 = vmatprep.subr.bf16.mxu0 0
      %957 = vmatpush1.bf16.msra.mxu0 0
      %958 = vmatprep.subr.bf16.mxu0 0
      %959 = vmatpush1.bf16.msra.mxu0 0
      %960 = vmatprep.subr.bf16.mxu0 0
      %961 = vmatpush1.bf16.msra.mxu0 0
      %962 = vmatprep.subr.bf16.mxu0 0
      %963 = vmatpush1.bf16.msra.mxu0 0
      %964 = vmatprep.subr.bf16.mxu0 0
      %965 = vmatpush1.bf16.msra.mxu0 %v900
      %966 = vmatprep.subr.bf16.mxu0 0
      %967 = vmatpush2.bf16.msra.mxu0 0
      %968 = vmatprep.subr.bf16.mxu0 0
      %969 = vmatpush2.bf16.msra.mxu0 0
      %970 = vmatprep.subr.bf16.mxu0 0
      %971 = vmatpush2.bf16.msra.mxu0 0
      %972 = vmatprep.subr.bf16.mxu0 0
      %973 = vmatpush2.bf16.msra.mxu0 0
      %974 = vmatprep.subr.bf16.mxu0 0
      %975 = vmatpush2.bf16.msra.mxu0 0
      %976 = vmatprep.subr.bf16.mxu0 0
      %977 = vmatpush2.bf16.msra.mxu0 0
      %978 = vmatprep.subr.bf16.mxu0 0
      %979 = vmatpush2.bf16.msra.mxu0 0
      %980 = vmatprep.subr.bf16.mxu0 0
      %981 = vmatpush2.bf16.msra.mxu0 0
      %982 = vmatprep.mubr.bf16.mxu0 0
      %983 = vmatmul.mubr.bf16.gmra.mxu0 %v905
      %v984 = vpop.f32.mrf.mxu0
      %v985 = vadd.f32 0.0, %v984
      %v986 = vpop.f32.mrf.mxu0
      %v987 = vpop.f32.mrf.mxu0
      %v988 = vadd.f32 0.0, %v987
      %v989 = vpop.f32.mrf.mxu0
      %990 = vdwg.mxu0
      %v991 = vadd.f32 %v875, %v942
      %v992 = vadd.f32 %v876, %v944
      %v993 = vadd.f32 %v877, %v985
      %v994 = vadd.f32 %v878, %v946
      %v995 = vadd.f32 %v879, %v948
      %v996 = vadd.f32 %v880, %v988
      %s997 = scalar_lea.vmem %s1, 56
      %v998 = vld [vmem:[%s997] sm:$0xf]
      %v999 = vld [vmem:[%s997 + $0x4] sm:$0xf]
      %v1002 = vunpack.c.l.b16 %v998
      %v1003 = vunpack.c.l.b16 %v999
      %v1004 = vpack.c.b16 %v1003, %v1002
      %1005 = vrot.lane.b32.xlu0 %v215, 91
      %v1006 = vpop.permute.xlu0 %1005
      %1007 = vrot.lane.b32.xlu0 %v216, 91
      %v1008 = vpop.permute.xlu0 %1007
      %1009 = vrot.lane.b32.xlu0 %v217, 91
      %v1010 = vpop.permute.xlu0 %1009
      %1011 = vrot.lane.b32.xlu0 %v218, 91
      %v1012 = vpop.permute.xlu0 %1011
      %vm1013 = vcmask 744448
      %v1014 = vsel %vm1013, %v1006, %v1008
      %v1015 = vsel %vm1013, %v1008, %v1010
      %v1016 = vsel %vm1013, %v1010, %v1012
      %v1021 = vsel %vm234, %v1004, 0
      %1023 = vmatprep.subr.bf16.mxu0 0
      %1024 = vmatpush1.bf16.msra.mxu0 0
      %1025 = vmatprep.subr.bf16.mxu0 0
      %1026 = vmatpush1.bf16.msra.mxu0 0
      %1027 = vmatprep.subr.bf16.mxu0 0
      %1028 = vmatpush1.bf16.msra.mxu0 0
      %1029 = vmatprep.subr.bf16.mxu0 0
      %1030 = vmatpush1.bf16.msra.mxu0 0
      %1031 = vmatprep.subr.bf16.mxu0 0
      %1032 = vmatpush1.bf16.msra.mxu0 0
      %1033 = vmatprep.subr.bf16.mxu0 0
      %1034 = vmatpush1.bf16.msra.mxu0 0
      %1035 = vmatprep.subr.bf16.mxu0 0
      %1036 = vmatpush1.bf16.msra.mxu0 0
      %1037 = vmatprep.subr.bf16.mxu0 %v1015
      %1038 = vmatpush1.bf16.msra.mxu0 %v1014
      %1039 = vmatprep.subr.bf16.mxu0 0
      %1040 = vmatpush2.bf16.msra.mxu0 0
      %1041 = vmatprep.subr.bf16.mxu0 0
      %1042 = vmatpush2.bf16.msra.mxu0 0
      %1043 = vmatprep.subr.bf16.mxu0 0
      %1044 = vmatpush2.bf16.msra.mxu0 0
      %1045 = vmatprep.subr.bf16.mxu0 0
      %1046 = vmatpush2.bf16.msra.mxu0 0
      %1047 = vmatprep.subr.bf16.mxu0 0
      %1048 = vmatpush2.bf16.msra.mxu0 0
      %1049 = vmatprep.subr.bf16.mxu0 0
      %1050 = vmatpush2.bf16.msra.mxu0 0
      %1051 = vmatprep.subr.bf16.mxu0 0
      %1052 = vmatpush2.bf16.msra.mxu0 0
      %1053 = vmatprep.subr.bf16.mxu0 0
      %1054 = vmatpush2.bf16.msra.mxu0 0
      %1055 = vmatprep.mubr.bf16.mxu0 0
      %1056 = vmatmul.mubr.bf16.gmra.mxu0 %v1021
      %v1057 = vpop.f32.mrf.mxu0
      %v1058 = vadd.f32 0.0, %v1057
      %v1059 = vpop.f32.mrf.mxu0
      %v1060 = vadd.f32 0.0, %v1059
      %v1061 = vpop.f32.mrf.mxu0
      %v1062 = vadd.f32 0.0, %v1061
      %v1063 = vpop.f32.mrf.mxu0
      %v1064 = vadd.f32 0.0, %v1063
      %1065 = vdwg.mxu0
      %1066 = vmatprep.subr.bf16.mxu0 0
      %1067 = vmatpush1.bf16.msra.mxu0 0
      %1068 = vmatprep.subr.bf16.mxu0 0
      %1069 = vmatpush1.bf16.msra.mxu0 0
      %1070 = vmatprep.subr.bf16.mxu0 0
      %1071 = vmatpush1.bf16.msra.mxu0 0
      %1072 = vmatprep.subr.bf16.mxu0 0
      %1073 = vmatpush1.bf16.msra.mxu0 0
      %1074 = vmatprep.subr.bf16.mxu0 0
      %1075 = vmatpush1.bf16.msra.mxu0 0
      %1076 = vmatprep.subr.bf16.mxu0 0
      %1077 = vmatpush1.bf16.msra.mxu0 0
      %1078 = vmatprep.subr.bf16.mxu0 0
      %1079 = vmatpush1.bf16.msra.mxu0 0
      %1080 = vmatprep.subr.bf16.mxu0 0
      %1081 = vmatpush1.bf16.msra.mxu0 %v1016
      %1082 = vmatprep.subr.bf16.mxu0 0
      %1083 = vmatpush2.bf16.msra.mxu0 0
      %1084 = vmatprep.subr.bf16.mxu0 0
      %1085 = vmatpush2.bf16.msra.mxu0 0
      %1086 = vmatprep.subr.bf16.mxu0 0
      %1087 = vmatpush2.bf16.msra.mxu0 0
      %1088 = vmatprep.subr.bf16.mxu0 0
      %1089 = vmatpush2.bf16.msra.mxu0 0
      %1090 = vmatprep.subr.bf16.mxu0 0
      %1091 = vmatpush2.bf16.msra.mxu0 0
      %1092 = vmatprep.subr.bf16.mxu0 0
      %1093 = vmatpush2.bf16.msra.mxu0 0
      %1094 = vmatprep.subr.bf16.mxu0 0
      %1095 = vmatpush2.bf16.msra.mxu0 0
      %1096 = vmatprep.subr.bf16.mxu0 0
      %1097 = vmatpush2.bf16.msra.mxu0 0
      %1098 = vmatprep.mubr.bf16.mxu0 0
      %1099 = vmatmul.mubr.bf16.gmra.mxu0 %v1021
      %v1100 = vpop.f32.mrf.mxu0
      %v1101 = vadd.f32 0.0, %v1100
      %v1102 = vpop.f32.mrf.mxu0
      %v1103 = vpop.f32.mrf.mxu0
      %v1104 = vadd.f32 0.0, %v1103
      %v1105 = vpop.f32.mrf.mxu0
      %1106 = vdwg.mxu0
      %v1107 = vadd.f32 %v991, %v1058
      %v1108 = vadd.f32 %v992, %v1060
      %v1109 = vadd.f32 %v993, %v1101
      %v1110 = vadd.f32 %v994, %v1062
      %v1111 = vadd.f32 %v995, %v1064
      %v1112 = vadd.f32 %v996, %v1104
      %s1113 = scalar_lea.vmem %s1, 64
      %v1114 = vld [vmem:[%s1113] sm:$0xf]
      %v1115 = vld [vmem:[%s1113 + $0x4] sm:$0xf]
      %v1118 = vunpack.c.l.b16 %v1114
      %v1119 = vunpack.c.l.b16 %v1115
      %v1120 = vpack.c.b16 %v1119, %v1118
      %1121 = vrot.lane.b32.xlu0 %v215, 90
      %v1122 = vpop.permute.xlu0 %1121
      %1123 = vrot.lane.b32.xlu0 %v216, 90
      %v1124 = vpop.permute.xlu0 %1123
      %1125 = vrot.lane.b32.xlu0 %v217, 90
      %v1126 = vpop.permute.xlu0 %1125
      %1127 = vrot.lane.b32.xlu0 %v218, 90
      %v1128 = vpop.permute.xlu0 %1127
      %vm1129 = vcmask 736256
      %v1130 = vsel %vm1129, %v1122, %v1124
      %v1131 = vsel %vm1129, %v1124, %v1126
      %v1132 = vsel %vm1129, %v1126, %v1128
      %v1137 = vsel %vm234, %v1120, 0
      %1139 = vmatprep.subr.bf16.mxu0 0
      %1140 = vmatpush1.bf16.msra.mxu0 0
      %1141 = vmatprep.subr.bf16.mxu0 0
      %1142 = vmatpush1.bf16.msra.mxu0 0
      %1143 = vmatprep.subr.bf16.mxu0 0
      %1144 = vmatpush1.bf16.msra.mxu0 0
      %1145 = vmatprep.subr.bf16.mxu0 0
      %1146 = vmatpush1.bf16.msra.mxu0 0
      %1147 = vmatprep.subr.bf16.mxu0 0
      %1148 = vmatpush1.bf16.msra.mxu0 0
      %1149 = vmatprep.subr.bf16.mxu0 0
      %1150 = vmatpush1.bf16.msra.mxu0 0
      %1151 = vmatprep.subr.bf16.mxu0 0
      %1152 = vmatpush1.bf16.msra.mxu0 0
      %1153 = vmatprep.subr.bf16.mxu0 %v1131
      %1154 = vmatpush1.bf16.msra.mxu0 %v1130
      %1155 = vmatprep.subr.bf16.mxu0 0
      %1156 = vmatpush2.bf16.msra.mxu0 0
      %1157 = vmatprep.subr.bf16.mxu0 0
      %1158 = vmatpush2.bf16.msra.mxu0 0
      %1159 = vmatprep.subr.bf16.mxu0 0
      %1160 = vmatpush2.bf16.msra.mxu0 0
      %1161 = vmatprep.subr.bf16.mxu0 0
      %1162 = vmatpush2.bf16.msra.mxu0 0
      %1163 = vmatprep.subr.bf16.mxu0 0
      %1164 = vmatpush2.bf16.msra.mxu0 0
      %1165 = vmatprep.subr.bf16.mxu0 0
      %1166 = vmatpush2.bf16.msra.mxu0 0
      %1167 = vmatprep.subr.bf16.mxu0 0
      %1168 = vmatpush2.bf16.msra.mxu0 0
      %1169 = vmatprep.subr.bf16.mxu0 0
      %1170 = vmatpush2.bf16.msra.mxu0 0
      %1171 = vmatprep.mubr.bf16.mxu0 0
      %1172 = vmatmul.mubr.bf16.gmra.mxu0 %v1137
      %v1173 = vpop.f32.mrf.mxu0
      %v1174 = vadd.f32 0.0, %v1173
      %v1175 = vpop.f32.mrf.mxu0
      %v1176 = vadd.f32 0.0, %v1175
      %v1177 = vpop.f32.mrf.mxu0
      %v1178 = vadd.f32 0.0, %v1177
      %v1179 = vpop.f32.mrf.mxu0
      %v1180 = vadd.f32 0.0, %v1179
      %1181 = vdwg.mxu0
      %1182 = vmatprep.subr.bf16.mxu0 0
      %1183 = vmatpush1.bf16.msra.mxu0 0
      %1184 = vmatprep.subr.bf16.mxu0 0
      %1185 = vmatpush1.bf16.msra.mxu0 0
      %1186 = vmatprep.subr.bf16.mxu0 0
      %1187 = vmatpush1.bf16.msra.mxu0 0
      %1188 = vmatprep.subr.bf16.mxu0 0
      %1189 = vmatpush1.bf16.msra.mxu0 0
      %1190 = vmatprep.subr.bf16.mxu0 0
      %1191 = vmatpush1.bf16.msra.mxu0 0
      %1192 = vmatprep.subr.bf16.mxu0 0
      %1193 = vmatpush1.bf16.msra.mxu0 0
      %1194 = vmatprep.subr.bf16.mxu0 0
      %1195 = vmatpush1.bf16.msra.mxu0 0
      %1196 = vmatprep.subr.bf16.mxu0 0
      %1197 = vmatpush1.bf16.msra.mxu0 %v1132
      %1198 = vmatprep.subr.bf16.mxu0 0
      %1199 = vmatpush2.bf16.msra.mxu0 0
      %1200 = vmatprep.subr.bf16.mxu0 0
      %1201 = vmatpush2.bf16.msra.mxu0 0
      %1202 = vmatprep.subr.bf16.mxu0 0
      %1203 = vmatpush2.bf16.msra.mxu0 0
      %1204 = vmatprep.subr.bf16.mxu0 0
      %1205 = vmatpush2.bf16.msra.mxu0 0
      %1206 = vmatprep.subr.bf16.mxu0 0
      %1207 = vmatpush2.bf16.msra.mxu0 0
      %1208 = vmatprep.subr.bf16.mxu0 0
      %1209 = vmatpush2.bf16.msra.mxu0 0
      %1210 = vmatprep.subr.bf16.mxu0 0
      %1211 = vmatpush2.bf16.msra.mxu0 0
      %1212 = vmatprep.subr.bf16.mxu0 0
      %1213 = vmatpush2.bf16.msra.mxu0 0
      %1214 = vmatprep.mubr.bf16.mxu0 0
      %1215 = vmatmul.mubr.bf16.gmra.mxu0 %v1137
      %v1216 = vpop.f32.mrf.mxu0
      %v1217 = vadd.f32 0.0, %v1216
      %v1218 = vpop.f32.mrf.mxu0
      %v1219 = vpop.f32.mrf.mxu0
      %v1220 = vadd.f32 0.0, %v1219
      %v1221 = vpop.f32.mrf.mxu0
      %1222 = vdwg.mxu0
      %v1223 = vadd.f32 %v1107, %v1174
      %v1224 = vadd.f32 %v1108, %v1176
      %v1225 = vadd.f32 %v1109, %v1217
      %v1226 = vadd.f32 %v1110, %v1178
      %v1227 = vadd.f32 %v1111, %v1180
      %v1228 = vadd.f32 %v1112, %v1220
      %p1229 = scmp.eq.s32.totalorder %s18, 0
      %p1230 = scmp.eq.s32.totalorder %s19, 0
      %p1231 = pnand %p1229, %p1230
      %p1232 = pneg %p1231
      // Predicated region
      $region33: #{_lambda_.3} parent=31 // pred_check
        _
      $region34: #{_lambda_.3} parent=31 // pred_check_branch
        %1234 = sbr.rel (%p1231) target = $region36
      $region35: #{_lambda_.3} parent=31 // pred_region
        %vm1235 = vcmask 7168
        %1236 = vst.msk [vmem:[#allocation2] sm:$0xff] %vm1235, 0.0
        %1237 = vst.msk [vmem:[#allocation2 + $0x8] sm:$0xff] %vm1235, 0.0
        %1238 = vst.msk [vmem:[#allocation3] sm:$0xff] %vm1235, 0.0
        %1239 = vst.msk [vmem:[#allocation3 + $0x8] sm:$0xff] %vm1235, 0.0
      $region36: #{_lambda_.3} parent=31 // pred_fallthru
        _
      // Predicated region
      $region37: #{_lambda_.3} parent=31 // pred_check
        %p1240 = pneg %p1229
      $region38: #{_lambda_.3} parent=31 // pred_check_branch
        %1242 = sbr.rel (%p1240) target = $region40
      $region39: #{_lambda_.3} parent=31 // pred_region
        %v1243 = vld [vmem:[%s2] sm:$0x7]
        %v1245 = vlaneseq
        %v1246 = vshrl.u32 %v1245, 7
        %v1247 = vsub.s32 0, %v1246
        %v1248 = vrot.slane %v1243, %v1247
        %v1249 = vlaneseq
        %v1250 = vshrl.u32 %v1249, 7
        %v1251 = vsub.s32 1, %v1250
        %v1252 = vrot.slane %v1243, %v1251
        %v1253 = vlaneseq
        %v1254 = vshrl.u32 %v1253, 7
        %v1255 = vsub.s32 2, %v1254
        %v1256 = vrot.slane %v1243, %v1255
        %v1260 = vmul.f32 %v1223, %v1248
        %v1261 = vmul.f32 %v1224, %v1252
        %v1262 = vmul.f32 %v1225, %v1256
        %v1263 = vmul.f32 %v1226, %v1248
        %v1264 = vmul.f32 %v1227, %v1252
        %v1265 = vmul.f32 %v1228, %v1256
        %v1266 = vld [vmem:[#allocation2] sm:$0xff]
        %v1267 = vld [vmem:[#allocation2 + $0x8] sm:$0xff]
        %v1268 = vadd.f32 %v1260, %v1261
        %v1269 = vadd.f32 %v1268, %v1262
        %1270 = vadd.xlane.f32.xlu0 %v1269
        %v1271 = vpop.xlane.xlu0 %1270
        %v1272 = vadd.f32 %v1263, %v1264
        %v1273 = vadd.f32 %v1272, %v1265
        %1274 = vadd.xlane.f32.xlu0 %v1273
        %v1275 = vpop.xlane.xlu0 %1274
        %v1276 = vadd.f32 %v1266, %v1271
        %v1277 = vadd.f32 %v1267, %v1275
        %vm1278 = vcmask 7168
        %1279 = vst.msk [vmem:[#allocation2] sm:$0xff] %vm1278, %v1276
        %1280 = vst.msk [vmem:[#allocation2 + $0x8] sm:$0xff] %vm1278, %v1277
        %v1281 = vld [vmem:[#allocation3] sm:$0xff]
        %v1282 = vld [vmem:[#allocation3 + $0x8] sm:$0xff]
        %v1283 = vmul.f32 %v1223, %v1260
        %v1284 = vmul.f32 %v1224, %v1261
        %v1285 = vmul.f32 %v1225, %v1262
        %v1286 = vmul.f32 %v1226, %v1263
        %v1287 = vmul.f32 %v1227, %v1264
        %v1288 = vmul.f32 %v1228, %v1265
        %v1289 = vadd.f32 %v1283, %v1284
        %v1290 = vadd.f32 %v1289, %v1285
        %1291 = vadd.xlane.f32.xlu0 %v1290
        %v1292 = vpop.xlane.xlu0 %1291
        %v1293 = vadd.f32 %v1286, %v1287
        %v1294 = vadd.f32 %v1293, %v1288
        %1295 = vadd.xlane.f32.xlu0 %v1294
        %v1296 = vpop.xlane.xlu0 %1295
        %v1297 = vadd.f32 %v1281, %v1292
        %v1298 = vadd.f32 %v1282, %v1296
        %1299 = vst.msk [vmem:[#allocation3] sm:$0xff] %vm1278, %v1297
        %1300 = vst.msk [vmem:[#allocation3 + $0x8] sm:$0xff] %vm1278, %v1298
      $region40: #{_lambda_.3} parent=31 // pred_fallthru
        _
      %p1301 = scmp.eq.s32.totalorder %s18, 1
      // Predicated region
      $region41: #{_lambda_.3} parent=31 // pred_check
        %p1302 = pneg %p1301
      $region42: #{_lambda_.3} parent=31 // pred_check_branch
        %1304 = sbr.rel (%p1302) target = $region44
      $region43: #{_lambda_.3} parent=31 // pred_region
        %v1305 = vld [vmem:[#allocation2] sm:$0xff]
        %v1306 = vld [vmem:[#allocation2 + $0x8] sm:$0xff]
        %v1307 = vmul.f32 %v1305, 0.001953125
        %v1308 = vmul.f32 %v1306, 0.001953125
        %v1309 = vld [vmem:[#allocation3] sm:$0xff]
        %v1310 = vld [vmem:[#allocation3 + $0x8] sm:$0xff]
        %v1311 = vmul.f32 %v1309, 0.001953125
        %v1312 = vmul.f32 %v1310, 0.001953125
        %v1313 = vmul.f32 %v1307, %v1307
        %v1314 = vmul.f32 %v1308, %v1308
        %v1315 = vsub.f32 %v1311, %v1313
        %v1316 = vsub.f32 %v1312, %v1314
        %v1317 = vmax.f32 %v1315, 0.0
        %v1318 = vmax.f32 %v1316, 0.0
        %v1319 = vadd.f32 %v1317, 1e-05
        %v1320 = vadd.f32 %v1318, 1e-05
        %v1321 = vrsqrt.pop %v1319
        %v1322 = vrsqrt.pop %v1320
        %1324 = vset.pattern.permute.xlu0 0
        %1325 = vperm.xlu0 %1324, %v1307
        %v1326 = vpop.permute.xlu0 %1325
        %1329 = vset.pattern.permute.xlu0 0
        %1330 = vperm.xlu0 %1329, %v1308
        %v1331 = vpop.permute.xlu0 %1330
        %v1333 = vsub.f32 %v1223, %v1326
        %v1334 = vsub.f32 %v1224, %v1326
        %v1335 = vsub.f32 %v1225, %v1326
        %v1336 = vsub.f32 %v1226, %v1331
        %v1337 = vsub.f32 %v1227, %v1331
        %v1338 = vsub.f32 %v1228, %v1331
        %1340 = vset.pattern.permute.xlu0 0
        %1341 = vperm.xlu0 %1340, %v1321
        %v1342 = vpop.permute.xlu0 %1341
        %1345 = vset.pattern.permute.xlu0 0
        %1346 = vperm.xlu0 %1345, %v1322
        %v1347 = vpop.permute.xlu0 %1346
        %v1349 = vmul.f32 %v1333, %v1342
        %v1350 = vmul.f32 %v1334, %v1342
        %v1351 = vmul.f32 %v1335, %v1342
        %v1352 = vmul.f32 %v1336, %v1347
        %v1353 = vmul.f32 %v1337, %v1347
        %v1354 = vmul.f32 %v1338, %v1347
        %v1355 = vmax.f32 %v1349, 0.0
        %v1356 = vmax.f32 %v1350, 0.0
        %v1357 = vmax.f32 %v1351, 0.0
        %v1358 = vmax.f32 %v1352, 0.0
        %v1359 = vmax.f32 %v1353, 0.0
        %v1360 = vmax.f32 %v1354, 0.0
        %v1361 = vpack.c.bf16 %v1358, %v1355
        %v1362 = vpack.c.bf16 %v1359, %v1356
        %v1363 = vpack.c.bf16 %v1360, %v1357
        %v1367 = vunpack.c.l.b16 %v1361
        %v1368 = vunpack.c.l.b16 %v1362
        %v1369 = vunpack.c.l.b16 %v1363
        %v1370 = vunpack.c.h.b16 %v1361
        %v1371 = vunpack.c.h.b16 %v1362
        %v1372 = vunpack.c.h.b16 %v1363
        %v1373 = vpack.c.b16 %v1368, %v1367
        %v1374 = vpack.c.b16 %v1369, %v1369
        %v1375 = vpack.c.b16 %v1371, %v1370
        %v1376 = vpack.c.b16 %v1372, %v1372
        %1381 = vst [vmem:[%s186] sm:$0xff] %v1373
        %1382 = vst [vmem:[%s186 + $0x8] sm:$0xf] %v1374
        %1383 = vst [vmem:[%s186 + $0xc] sm:$0xff] %v1375
        %1384 = vst [vmem:[%s186 + $0x14] sm:$0xf] %v1376
      $region44: #{_lambda_.3} parent=31 // pred_fallthru
        _
      %s1385 = smul.u32 %s18, %s19
      %p1386 = scmp.lt.s32.totalorder %s1385, 1
      %s1387 = scalar_select %p1386, %s1385, 1
      %s1388 = smul.addr %s1387, 6
      %s1389 = smul.addr %s1388, 4
      %s1390 = scalar_lea.vmem %s3, %s1389
      // Predicated region
      $region45: #{_lambda_.3} parent=31 // pred_check
        %p1391 = pneg %p114
      $region46: #{_lambda_.3} parent=31 // pred_check_branch
        %1393 = sbr.rel (%p1391) target = $region48
      $region47: #{_lambda_.3} parent=31 // pred_region
        %s1394 = smul.u32 %s18, %s19
      $region48: #{_lambda_.3} parent=31 // pred_fallthru
        _
    $region32: #{_lambda_.3} parent=5 // pred_fallthru
      _
    %p1395 = scmp.le.s32.totalorder 2, %s9
    // Predicated region
    $region49: #{_lambda_.3} parent=5 // pred_check
      %p1396 = pneg %p1395
    $region50: #{_lambda_.3} parent=5 // pred_check_branch
      %1398 = sbr.rel (%p1396) target = $region52
    $region51: #{_lambda_.3} parent=5 // pred_region
      %s1399 = ssub.s32 %s9, 2
      // Predicated region
      $region53: #{_lambda_.3} parent=51 // pred_check
        %p1400 = pneg %p120
      $region54: #{_lambda_.3} parent=51 // pred_check_branch
        %1402 = sbr.rel (%p1400) target = $region56
      $region55: #{_lambda_.3} parent=51 // pred_region
        %s1403 = smul.u32 %s20, %s21
        %p1404 = scmp.lt.s32.totalorder %s1403, 1
        %s1405 = scalar_select %p1404, %s1403, 1
        %s1406 = smul.addr %s1405, 6
        %s1407 = smul.addr %s1406, 4
        %s1408 = scalar_lea.vmem %s3, %s1407
      $region56: #{_lambda_.3} parent=51 // pred_fallthru
        _
    $region52: #{_lambda_.3} parent=5 // pred_fallthru
      _
  $region6: #{_lambda_.3} parent=0 // loop_footer
    %s13 = sadd.s32 1, %s9
  $region7: #{_lambda_.3} parent=0 // loop_footer_branch
    %8 = sbr.rel target = $region3
  $region8: #{_lambda_.3} parent=0 // loop_exit
    _

</llo_original>
